<compile_context>
chip_gen: v7x
topology: tpu7x:2x2x1
jax: 0.10.0
libtpu: 0.0.40
codegen_flags: <defaults>
</compile_context>

<pallas_src>
import jax
import jax.numpy as jnp
from jax.experimental import pallas as pl
from jax.experimental.pallas import tpu as pltpu


def fixed_padding(kernel_size, dilation):
    kernel_size_effective = kernel_size + (kernel_size - 1) * (dilation - 1)
    pad_total = kernel_size_effective - 1
    pad_beg = pad_total // 2
    pad_end = pad_total - pad_beg
    return pad_beg, pad_end


def _relu6(x):
    return jnp.minimum(jnp.maximum(x, 0.0), 6.0)


def _make_kernel(*, stride, dilation, expand_ratio, use_res,
                 Hp, Wp, C, hidden, oup, Ho, Wo):
    def kernel(*refs):
        refs = list(refs)
        dw_scr = refs.pop()          # VMEM scratch (Ho*Wo, hidden) f32
        h_scr = refs.pop()           # VMEM scratch (Hp*Wp, hidden) f32
        o_ref = refs.pop()           # output block (1, oup, Ho*Wo)
        it = iter(refs)
        x_ref = next(it)             # (1, Hp*Wp, C) padded, channels-last, flat
        xres_ref = next(it) if use_res else None   # (1, oup, H*W)
        if expand_ratio != 1:
            we_ref, s1_ref, b1_ref = next(it), next(it), next(it)
        wd_ref, s2_ref, b2_ref = next(it), next(it), next(it)
        wp_ref, s3_ref, b3_ref = next(it), next(it), next(it)

        # --- 1x1 expand + BN + ReLU6 : single matmul over all padded rows ---
        # (Applied to the zero-padded halo, exactly like the PyTorch module,
        #  which pads before the whole Sequential.)
        x_flat = x_ref[0]                                          # (Hp*Wp, C)
        if expand_ratio != 1:
            h = jnp.dot(x_flat, we_ref[...],
                        preferred_element_type=jnp.float32)        # (Hp*Wp, hidden)
            h = _relu6(h * s1_ref[...] + b1_ref[...])
        else:
            h = x_flat.astype(jnp.float32)
        h_scr[...] = h

        # --- hoisted loop invariants for the depthwise stage ---
        wd_all = wd_ref[...]                                       # (9, hidden)
        taps = [wd_all[k:k + 1, :] for k in range(9)]              # 9 x (1, hidden)
        s2b = s2_ref[...]                                          # (1, hidden)
        b2b = b2_ref[...]

        span = stride * (Wo - 1) + 1   # columns touched in x by one output row

        # --- depthwise 3x3 + BN + ReLU6, fori_loop over output rows ---
        def dw_row(i, carry):
            acc = jnp.zeros((Wo, hidden), jnp.float32)
            for ky in range(3):
                row0 = (i * stride + ky * dilation) * Wp
                src = h_scr[pl.ds(row0, Wp), :]                    # (Wp, hidden)
                for kx in range(3):
                    x0 = kx * dilation
                    if stride == 1:
                        win = src[x0:x0 + Wo, :]                   # (Wo, hidden)
                    else:
                        win = jax.lax.slice(src, (x0, 0),
                                            (x0 + span, hidden),
                                            (stride, 1))
                    acc = acc + win * taps[3 * ky + kx]
            acc = _relu6(acc * s2b + b2b)                          # (Wo, hidden)
            dst = i * Wo
            if Wo % 8 == 0:
                dst = pl.multiple_of(dst, 8)
            dw_scr[pl.ds(dst, Wo), :] = acc
            return carry

        jax.lax.fori_loop(0, Ho, dw_row, 0)

        # --- 1x1 projection + BN (+ residual): single matmul, transposed so
        #     the output store is lane-dense (last dim = Ho*Wo) ---
        dw_all = dw_scr[...]                                       # (Ho*Wo, hidden)
        out_t = jax.lax.dot_general(
            wp_ref[...], dw_all,                                   # (oup,h) x (Ho*Wo,h)^T
            dimension_numbers=(((1,), (1,)), ((), ())),
            preferred_element_type=jnp.float32)                    # (oup, Ho*Wo)
        out_t = out_t * s3_ref[...] + b3_ref[...]                  # (oup,1) broadcast
        if use_res:
            out_t = out_t + xres_ref[0].astype(jnp.float32)
        o_ref[0] = out_t.astype(o_ref.dtype)

    return kernel


def inverted_residual_forward(x_nhwc, params, *, inp, oup, stride, dilation,
                              expand_ratio):
    N, H, W, C = x_nhwc.shape
    assert C == inp
    hidden = int(round(inp * expand_ratio))
    use_res = (stride == 1) and (inp == oup)

    pad_beg, pad_end = fixed_padding(3, dilation)
    x_pad = jnp.pad(x_nhwc, ((0, 0), (pad_beg, pad_end),
                             (pad_beg, pad_end), (0, 0)))
    Hp, Wp = H + pad_beg + pad_end, W + pad_beg + pad_end
    Ho = (Hp - dilation * 2 - 1) // stride + 1
    Wo = (Wp - dilation * 2 - 1) // stride + 1

    # --- JAX-side (free) layout plumbing ---
    x_flat = x_pad.reshape(N, Hp * Wp, C)                  # expand-matmul layout
    kparams = {}
    if expand_ratio != 1:
        kparams["we"] = params["we"]                       # (C, hidden)
        kparams["s1"] = params["s1"]                       # (1, hidden)
        kparams["b1"] = params["b1"]
    kparams["wd"] = params["wd"].reshape(3 * 3, hidden)    # (9, hidden)
    kparams["s2"] = params["s2"]
    kparams["b2"] = params["b2"]
    kparams["wp"] = jnp.transpose(params["wp"], (1, 0))    # (oup, hidden)
    kparams["s3"] = params["s3"].reshape(oup, 1)           # (oup, 1)
    kparams["b3"] = params["b3"].reshape(oup, 1)

    def full_spec(a):
        return pl.BlockSpec(a.shape, lambda n, _nd=a.ndim: (0,) * _nd)

    inputs = [x_flat]
    in_specs = [pl.BlockSpec((1, Hp * Wp, C), lambda n: (n, 0, 0))]
    if use_res:
        x_res = jnp.transpose(x_nhwc, (0, 3, 1, 2)).reshape(N, C, H * W)
        inputs.append(x_res)
        in_specs.append(pl.BlockSpec((1, C, H * W), lambda n: (n, 0, 0)))

    names = []
    if expand_ratio != 1:
        names += ["we", "s1", "b1"]
    names += ["wd", "s2", "b2", "wp", "s3", "b3"]
    for name in names:
        inputs.append(kparams[name])
        in_specs.append(full_spec(kparams[name]))

    kernel = _make_kernel(stride=stride, dilation=dilation,
                          expand_ratio=expand_ratio, use_res=use_res,
                          Hp=Hp, Wp=Wp, C=C, hidden=hidden, oup=oup,
                          Ho=Ho, Wo=Wo)

    out_t = pl.pallas_call(
        kernel,
        out_shape=jax.ShapeDtypeStruct((N, oup, Ho * Wo), jnp.float32),
        grid_spec=pltpu.PrefetchScalarGridSpec(
            num_scalar_prefetch=0,
            grid=(N,),
            in_specs=in_specs,
            out_specs=pl.BlockSpec((1, oup, Ho * Wo), lambda n: (n, 0, 0)),
            scratch_shapes=[
                pltpu.VMEM((Hp * Wp, hidden), jnp.float32),   # expanded activations
                pltpu.VMEM((Ho * Wo, hidden), jnp.float32),   # depthwise output
            ]),
        compiler_params=pltpu.CompilerParams(
            dimension_semantics=("parallel",)),
    )(*inputs)

    # back to NHWC for the caller (free XLA reshape/transpose)
    return jnp.transpose(out_t.reshape(N, oup, Ho, Wo), (0, 2, 3, 1))


def reference_forward(x_nhwc, params, *, inp, oup, stride, dilation, expand_ratio):
    """Pure-JAX reference (independent of the kernel) for verification."""
    hidden = int(round(inp * expand_ratio))
    pad_beg, pad_end = fixed_padding(3, dilation)
    xp = jnp.pad(x_nhwc, ((0, 0), (pad_beg, pad_end), (pad_beg, pad_end), (0, 0)))
    h = xp
    if expand_ratio != 1:
        h = jnp.einsum("nhwc,ce->nhwe", xp, params["we"],
                       precision=jax.lax.Precision.HIGHEST)
        h = jnp.clip(h * params["s1"] + params["b1"], 0.0, 6.0)
    dw = jax.lax.conv_general_dilated(
        h, params["wd"][:, :, None, :],
        window_strides=(stride, stride), padding="VALID",
        rhs_dilation=(dilation, dilation),
        dimension_numbers=("NHWC", "HWIO", "NHWC"),
        feature_group_count=hidden,
        precision=jax.lax.Precision.HIGHEST)
    dw = jnp.clip(dw * params["s2"] + params["b2"], 0.0, 6.0)
    out = jnp.einsum("nhwc,co->nhwo", dw, params["wp"],
                     precision=jax.lax.Precision.HIGHEST)
    out = out * params["s3"] + params["b3"]
    if stride == 1 and inp == oup:
        out = out + x_nhwc
    return out


if __name__ == "__main__":
    # Module config: InvertedResidual(inp=4, oup=4, stride=1, dilation=1, expand_ratio=6)
    inp, oup, stride, dilation, expand_ratio = 4, 4, 1, 1, 6
    N, H, W = 2, 16, 16
    hidden = int(round(inp * expand_ratio))

    key = jax.random.PRNGKey(0)
    kx, kwe, kwd, kwp, *kbn = jax.random.split(key, 4 + 12)

    # PyTorch-layout input, transposed to the wrapper's NHWC layout.
    x_nchw = jax.random.normal(kx, (N, inp, H, W), jnp.float32)
    x_nhwc = jnp.transpose(x_nchw, (0, 2, 3, 1))

    def bn_fold(kg, kb, km, kv, c):
        # TODO(synk): BatchNorm training-mode (batch statistics) is not modeled;
        # inference running-stat semantics folded into scale/bias instead.
        gamma = 1.0 + 0.1 * jax.random.normal(kg, (c,), jnp.float32)
        beta = 0.1 * jax.random.normal(kb, (c,), jnp.float32)
        mean = 0.1 * jax.random.normal(km, (c,), jnp.float32)
        var = 1.0 + 0.1 * jax.random.uniform(kv, (c,), jnp.float32)
        scale = gamma * jax.lax.rsqrt(var + 1e-5)
        bias = beta - mean * scale
        return scale.reshape(1, c), bias.reshape(1, c)

    s1, b1 = bn_fold(kbn[0], kbn[1], kbn[2], kbn[3], hidden)
    s2, b2 = bn_fold(kbn[4], kbn[5], kbn[6], kbn[7], hidden)
    s3, b3 = bn_fold(kbn[8], kbn[9], kbn[10], kbn[11], oup)

    params = dict(
        we=jax.random.normal(kwe, (inp, hidden), jnp.float32) / (inp ** 0.5),
        wd=jax.random.normal(kwd, (3, 3, hidden), jnp.float32) * 0.2,
        wp=jax.random.normal(kwp, (hidden, oup), jnp.float32) / (hidden ** 0.5),
        s1=s1, b1=b1, s2=s2, b2=b2, s3=s3, b3=b3,
    )

    out = inverted_residual_forward(
        x_nhwc, params, inp=inp, oup=oup, stride=stride,
        dilation=dilation, expand_ratio=expand_ratio)
    out = jax.block_until_ready(out)

    ref = reference_forward(
        x_nhwc, params, inp=inp, oup=oup, stride=stride,
        dilation=dilation, expand_ratio=expand_ratio)
    ref = jax.block_until_ready(ref)

    assert out.shape == ref.shape, (out.shape, ref.shape)
    err = float(jnp.max(jnp.abs(out - ref)))
    assert err < 5e-2, f"max abs err {err}"
    print("KERNEL_OK")
</pallas_src>

<mosaic_0001>
module attributes {stable_mosaic.version = 11 : i64} {
  func.func @kernel(%arg0: i32, %arg1: memref<1x324x4xf32, #tpu.memory_space<vmem>>, %arg2: memref<1x4x256xf32, #tpu.memory_space<vmem>>, %arg3: memref<4x24xf32, #tpu.memory_space<vmem>>, %arg4: memref<1x24xf32, #tpu.memory_space<vmem>>, %arg5: memref<1x24xf32, #tpu.memory_space<vmem>>, %arg6: memref<9x24xf32, #tpu.memory_space<vmem>>, %arg7: memref<1x24xf32, #tpu.memory_space<vmem>>, %arg8: memref<1x24xf32, #tpu.memory_space<vmem>>, %arg9: memref<4x24xf32, #tpu.memory_space<vmem>>, %arg10: memref<4x1xf32, #tpu.memory_space<vmem>>, %arg11: memref<4x1xf32, #tpu.memory_space<vmem>>, %arg12: memref<1x4x256xf32, #tpu.memory_space<vmem>>, %arg13: memref<324x24xf32, #tpu.memory_space<vmem>>, %arg14: memref<256x24xf32, #tpu.memory_space<vmem>>) attributes {dimension_semantics = [#tpu.dimension_semantics<parallel>], iteration_bounds = array<i64: 2>, scalar_prefetch = 0 : i64, scratch_operands = 2 : i64, tpu.core_type = #tpu.core_type<tc>, window_params = [{transform_indices = @transform_0, window_bounds = array<i64: 1, 324, 4>}, {transform_indices = @transform_1, window_bounds = array<i64: 1, 4, 256>}, {pipeline_mode = #tpu.pipeline_mode<synchronous>, transform_indices = @transform_2, window_bounds = array<i64: 4, 24>}, {pipeline_mode = #tpu.pipeline_mode<synchronous>, transform_indices = @transform_3, window_bounds = array<i64: 1, 24>}, {pipeline_mode = #tpu.pipeline_mode<synchronous>, transform_indices = @transform_4, window_bounds = array<i64: 1, 24>}, {pipeline_mode = #tpu.pipeline_mode<synchronous>, transform_indices = @transform_5, window_bounds = array<i64: 9, 24>}, {pipeline_mode = #tpu.pipeline_mode<synchronous>, transform_indices = @transform_6, window_bounds = array<i64: 1, 24>}, {pipeline_mode = #tpu.pipeline_mode<synchronous>, transform_indices = @transform_7, window_bounds = array<i64: 1, 24>}, {pipeline_mode = #tpu.pipeline_mode<synchronous>, transform_indices = @transform_8, window_bounds = array<i64: 4, 24>}, {pipeline_mode = #tpu.pipeline_mode<synchronous>, transform_indices = @transform_9, window_bounds = array<i64: 4, 1>}, {pipeline_mode = #tpu.pipeline_mode<synchronous>, transform_indices = @transform_10, window_bounds = array<i64: 4, 1>}, {transform_indices = @transform_11, window_bounds = array<i64: 1, 4, 256>}]} {
    %c0 = arith.constant 0 : index
    %c0_0 = arith.constant 0 : index
    %c0_1 = arith.constant 0 : index
    %0 = vector.load %arg1[%c0, %c0_0, %c0_1] : memref<1x324x4xf32, #tpu.memory_space<vmem>>, vector<1x324x4xf32>
    %1 = vector.shape_cast %0 : vector<1x324x4xf32> to vector<324x4xf32>
    %c0_2 = arith.constant 0 : index
    %c0_3 = arith.constant 0 : index
    %2 = vector.load %arg3[%c0_2, %c0_3] : memref<4x24xf32, #tpu.memory_space<vmem>>, vector<4x24xf32>
    %cst = arith.constant dense<0.000000e+00> : vector<324x24xf32>
    %3 = tpu.matmul %1, %2, %cst {dimension_numbers = #tpu.dot_dimension_numbers<[1], [0], [0], [1], [0, 0, 1, 1], [], []>} : vector<324x4xf32>, vector<4x24xf32>, vector<324x24xf32> -> vector<324x24xf32>
    %c0_4 = arith.constant 0 : index
    %c0_5 = arith.constant 0 : index
    %4 = vector.load %arg4[%c0_4, %c0_5] : memref<1x24xf32, #tpu.memory_space<vmem>>, vector<1x24xf32>
    %5 = vector.broadcast %4 : vector<1x24xf32> to vector<324x24xf32>
    %6 = arith.mulf %3, %5 : vector<324x24xf32>
    %c0_6 = arith.constant 0 : index
    %c0_7 = arith.constant 0 : index
    %7 = vector.load %arg5[%c0_6, %c0_7] : memref<1x24xf32, #tpu.memory_space<vmem>>, vector<1x24xf32>
    %8 = vector.broadcast %7 : vector<1x24xf32> to vector<324x24xf32>
    %9 = arith.addf %6, %8 : vector<324x24xf32>
    %cst_8 = arith.constant 0.000000e+00 : f32
    %10 = vector.broadcast %cst_8 : f32 to vector<324x24xf32>
    %11 = arith.maximumf %9, %10 : vector<324x24xf32>
    %cst_9 = arith.constant 6.000000e+00 : f32
    %12 = vector.broadcast %cst_9 : f32 to vector<324x24xf32>
    %13 = arith.minimumf %11, %12 : vector<324x24xf32>
    %c0_10 = arith.constant 0 : index
    %c0_11 = arith.constant 0 : index
    %14 = vector.load %arg13[%c0_10, %c0_11] : memref<324x24xf32, #tpu.memory_space<vmem>>, vector<324x24xf32>
    tpu.vector_store %arg13[%c0_10, %c0_11], %13 {strides = array<i32>} : memref<324x24xf32, #tpu.memory_space<vmem>>, vector<324x24xf32>,
    %c0_12 = arith.constant 0 : index
    %c0_13 = arith.constant 0 : index
    %15 = vector.load %arg6[%c0_12, %c0_13] : memref<9x24xf32, #tpu.memory_space<vmem>>, vector<9x24xf32>
    %16 = vector.extract_strided_slice %15 {offsets = [0, 0], sizes = [1, 24], strides = [1, 1]} : vector<9x24xf32> to vector<1x24xf32>
    %17 = vector.extract_strided_slice %15 {offsets = [1, 0], sizes = [1, 24], strides = [1, 1]} : vector<9x24xf32> to vector<1x24xf32>
    %18 = vector.extract_strided_slice %15 {offsets = [2, 0], sizes = [1, 24], strides = [1, 1]} : vector<9x24xf32> to vector<1x24xf32>
    %19 = vector.extract_strided_slice %15 {offsets = [3, 0], sizes = [1, 24], strides = [1, 1]} : vector<9x24xf32> to vector<1x24xf32>
    %20 = vector.extract_strided_slice %15 {offsets = [4, 0], sizes = [1, 24], strides = [1, 1]} : vector<9x24xf32> to vector<1x24xf32>
    %21 = vector.extract_strided_slice %15 {offsets = [5, 0], sizes = [1, 24], strides = [1, 1]} : vector<9x24xf32> to vector<1x24xf32>
    %22 = vector.extract_strided_slice %15 {offsets = [6, 0], sizes = [1, 24], strides = [1, 1]} : vector<9x24xf32> to vector<1x24xf32>
    %23 = vector.extract_strided_slice %15 {offsets = [7, 0], sizes = [1, 24], strides = [1, 1]} : vector<9x24xf32> to vector<1x24xf32>
    %24 = vector.extract_strided_slice %15 {offsets = [8, 0], sizes = [1, 24], strides = [1, 1]} : vector<9x24xf32> to vector<1x24xf32>
    %c0_14 = arith.constant 0 : index
    %c0_15 = arith.constant 0 : index
    %25 = vector.load %arg7[%c0_14, %c0_15] : memref<1x24xf32, #tpu.memory_space<vmem>>, vector<1x24xf32>
    %c0_16 = arith.constant 0 : index
    %c0_17 = arith.constant 0 : index
    %26 = vector.load %arg8[%c0_16, %c0_17] : memref<1x24xf32, #tpu.memory_space<vmem>>, vector<1x24xf32>
    %c0_i32 = arith.constant 0 : i32
    %c16_i32 = arith.constant 16 : i32
    %27 = arith.addi %c0_i32, %c16_i32 : i32
    %c1_i32 = arith.constant 1 : i32
    scf.for %arg15 = %c0_i32 to %27 step %c1_i32  : i32 {
      %cst_34 = arith.constant 0.000000e+00 : f32
      %43 = vector.broadcast %cst_34 : f32 to vector<16x24xf32>
      %c1_i32_35 = arith.constant 1 : i32
      %44 = arith.muli %arg15, %c1_i32_35 : i32
      %c0_i32_36 = arith.constant 0 : i32
      %45 = arith.addi %44, %c0_i32_36 : i32
      %c18_i32 = arith.constant 18 : i32
      %46 = arith.muli %45, %c18_i32 : i32
      %47 = arith.index_cast %46 : i32 to index
      %c0_37 = arith.constant 0 : index
      %48 = vector.load %arg13[%47, %c0_37] : memref<324x24xf32, #tpu.memory_space<vmem>>, vector<18x24xf32>
      %49 = vector.extract_strided_slice %48 {offsets = [0, 0], sizes = [16, 24], strides = [1, 1]} : vector<18x24xf32> to vector<16x24xf32>
      %50 = vector.broadcast %16 : vector<1x24xf32> to vector<16x24xf32>
      %51 = arith.mulf %49, %50 : vector<16x24xf32>
      %52 = arith.addf %43, %51 : vector<16x24xf32>
      %53 = vector.extract_strided_slice %48 {offsets = [1, 0], sizes = [16, 24], strides = [1, 1]} : vector<18x24xf32> to vector<16x24xf32>
      %54 = vector.broadcast %17 : vector<1x24xf32> to vector<16x24xf32>
      %55 = arith.mulf %53, %54 : vector<16x24xf32>
      %56 = arith.addf %52, %55 : vector<16x24xf32>
      %57 = vector.extract_strided_slice %48 {offsets = [2, 0], sizes = [16, 24], strides = [1, 1]} : vector<18x24xf32> to vector<16x24xf32>
      %58 = vector.broadcast %18 : vector<1x24xf32> to vector<16x24xf32>
      %59 = arith.mulf %57, %58 : vector<16x24xf32>
      %60 = arith.addf %56, %59 : vector<16x24xf32>
      %c1_i32_38 = arith.constant 1 : i32
      %61 = arith.muli %arg15, %c1_i32_38 : i32
      %c1_i32_39 = arith.constant 1 : i32
      %62 = arith.addi %61, %c1_i32_39 : i32
      %c18_i32_40 = arith.constant 18 : i32
      %63 = arith.muli %62, %c18_i32_40 : i32
      %64 = arith.index_cast %63 : i32 to index
      %c0_41 = arith.constant 0 : index
      %65 = vector.load %arg13[%64, %c0_41] : memref<324x24xf32, #tpu.memory_space<vmem>>, vector<18x24xf32>
      %66 = vector.extract_strided_slice %65 {offsets = [0, 0], sizes = [16, 24], strides = [1, 1]} : vector<18x24xf32> to vector<16x24xf32>
      %67 = vector.broadcast %19 : vector<1x24xf32> to vector<16x24xf32>
      %68 = arith.mulf %66, %67 : vector<16x24xf32>
      %69 = arith.addf %60, %68 : vector<16x24xf32>
      %70 = vector.extract_strided_slice %65 {offsets = [1, 0], sizes = [16, 24], strides = [1, 1]} : vector<18x24xf32> to vector<16x24xf32>
      %71 = vector.broadcast %20 : vector<1x24xf32> to vector<16x24xf32>
      %72 = arith.mulf %70, %71 : vector<16x24xf32>
      %73 = arith.addf %69, %72 : vector<16x24xf32>
      %74 = vector.extract_strided_slice %65 {offsets = [2, 0], sizes = [16, 24], strides = [1, 1]} : vector<18x24xf32> to vector<16x24xf32>
      %75 = vector.broadcast %21 : vector<1x24xf32> to vector<16x24xf32>
      %76 = arith.mulf %74, %75 : vector<16x24xf32>
      %77 = arith.addf %73, %76 : vector<16x24xf32>
      %c1_i32_42 = arith.constant 1 : i32
      %78 = arith.muli %arg15, %c1_i32_42 : i32
      %c2_i32 = arith.constant 2 : i32
      %79 = arith.addi %78, %c2_i32 : i32
      %c18_i32_43 = arith.constant 18 : i32
      %80 = arith.muli %79, %c18_i32_43 : i32
      %81 = arith.index_cast %80 : i32 to index
      %c0_44 = arith.constant 0 : index
      %82 = vector.load %arg13[%81, %c0_44] : memref<324x24xf32, #tpu.memory_space<vmem>>, vector<18x24xf32>
      %83 = vector.extract_strided_slice %82 {offsets = [0, 0], sizes = [16, 24], strides = [1, 1]} : vector<18x24xf32> to vector<16x24xf32>
      %84 = vector.broadcast %22 : vector<1x24xf32> to vector<16x24xf32>
      %85 = arith.mulf %83, %84 : vector<16x24xf32>
      %86 = arith.addf %77, %85 : vector<16x24xf32>
      %87 = vector.extract_strided_slice %82 {offsets = [1, 0], sizes = [16, 24], strides = [1, 1]} : vector<18x24xf32> to vector<16x24xf32>
      %88 = vector.broadcast %23 : vector<1x24xf32> to vector<16x24xf32>
      %89 = arith.mulf %87, %88 : vector<16x24xf32>
      %90 = arith.addf %86, %89 : vector<16x24xf32>
      %91 = vector.extract_strided_slice %82 {offsets = [2, 0], sizes = [16, 24], strides = [1, 1]} : vector<18x24xf32> to vector<16x24xf32>
      %92 = vector.broadcast %24 : vector<1x24xf32> to vector<16x24xf32>
      %93 = arith.mulf %91, %92 : vector<16x24xf32>
      %94 = arith.addf %90, %93 : vector<16x24xf32>
      %95 = vector.broadcast %25 : vector<1x24xf32> to vector<16x24xf32>
      %96 = arith.mulf %94, %95 : vector<16x24xf32>
      %97 = vector.broadcast %26 : vector<1x24xf32> to vector<16x24xf32>
      %98 = arith.addf %96, %97 : vector<16x24xf32>
      %cst_45 = arith.constant 0.000000e+00 : f32
      %99 = vector.broadcast %cst_45 : f32 to vector<16x24xf32>
      %100 = arith.maximumf %98, %99 : vector<16x24xf32>
      %cst_46 = arith.constant 6.000000e+00 : f32
      %101 = vector.broadcast %cst_46 : f32 to vector<16x24xf32>
      %102 = arith.minimumf %100, %101 : vector<16x24xf32>
      %c16_i32_47 = arith.constant 16 : i32
      %103 = arith.muli %arg15, %c16_i32_47 : i32
      %104 = tpu.assume_multiple %103, 8 : i32
      %105 = arith.index_cast %104 : i32 to index
      %c0_48 = arith.constant 0 : index
      %106 = vector.load %arg14[%105, %c0_48] : memref<256x24xf32, #tpu.memory_space<vmem>>, vector<16x24xf32>
      tpu.vector_store %arg14[%105, %c0_48], %102 {strides = array<i32>} : memref<256x24xf32, #tpu.memory_space<vmem>>, vector<16x24xf32>,
    }
    %c16_i32_18 = arith.constant 16 : i32
    %c0_19 = arith.constant 0 : index
    %c0_20 = arith.constant 0 : index
    %28 = vector.load %arg14[%c0_19, %c0_20] : memref<256x24xf32, #tpu.memory_space<vmem>>, vector<256x24xf32>
    %c0_21 = arith.constant 0 : index
    %c0_22 = arith.constant 0 : index
    %29 = vector.load %arg9[%c0_21, %c0_22] : memref<4x24xf32, #tpu.memory_space<vmem>>, vector<4x24xf32>
    %cst_23 = arith.constant dense<0.000000e+00> : vector<4x256xf32>
    %30 = tpu.matmul %29, %28, %cst_23 {dimension_numbers = #tpu.dot_dimension_numbers<[1], [1], [0], [0], [0, 0, 1, 0], [], []>} : vector<4x24xf32>, vector<256x24xf32>, vector<4x256xf32> -> vector<4x256xf32>
    %c0_24 = arith.constant 0 : index
    %c0_25 = arith.constant 0 : index
    %31 = vector.load %arg10[%c0_24, %c0_25] : memref<4x1xf32, #tpu.memory_space<vmem>>, vector<4x1xf32>
    %32 = vector.broadcast %31 : vector<4x1xf32> to vector<4x256xf32>
    %33 = arith.mulf %30, %32 : vector<4x256xf32>
    %c0_26 = arith.constant 0 : index
    %c0_27 = arith.constant 0 : index
    %34 = vector.load %arg11[%c0_26, %c0_27] : memref<4x1xf32, #tpu.memory_space<vmem>>, vector<4x1xf32>
    %35 = vector.broadcast %34 : vector<4x1xf32> to vector<4x256xf32>
    %36 = arith.addf %33, %35 : vector<4x256xf32>
    %c0_28 = arith.constant 0 : index
    %c0_29 = arith.constant 0 : index
    %c0_30 = arith.constant 0 : index
    %37 = vector.load %arg2[%c0_28, %c0_29, %c0_30] : memref<1x4x256xf32, #tpu.memory_space<vmem>>, vector<1x4x256xf32>
    %38 = vector.shape_cast %37 : vector<1x4x256xf32> to vector<4x256xf32>
    %39 = arith.addf %36, %38 : vector<4x256xf32>
    %c0_31 = arith.constant 0 : index
    %c0_32 = arith.constant 0 : index
    %c0_33 = arith.constant 0 : index
    %40 = vector.load %arg12[%c0_31, %c0_32, %c0_33] : memref<1x4x256xf32, #tpu.memory_space<vmem>>, vector<1x4x256xf32>
    %41 = vector.shape_cast %40 : vector<1x4x256xf32> to vector<4x256xf32>
    %42 = vector.shape_cast %39 : vector<4x256xf32> to vector<1x4x256xf32>
    tpu.vector_store %arg12[%c0_31, %c0_32, %c0_33], %42 {strides = array<i32>} : memref<1x4x256xf32, #tpu.memory_space<vmem>>, vector<1x4x256xf32>,
    return
  }
  func.func @transform_0(%arg0: i32) -> (i32, i32, i32) {
    %c0_i32 = arith.constant 0 : i32
    %c0_i32_0 = arith.constant 0 : i32
    %c0_i32_1 = arith.constant 0 : i32
    return %arg0, %c0_i32, %c0_i32_0 : i32, i32, i32
  }
  func.func @transform_1(%arg0: i32) -> (i32, i32, i32) {
    %c0_i32 = arith.constant 0 : i32
    %c0_i32_0 = arith.constant 0 : i32
    %c0_i32_1 = arith.constant 0 : i32
    return %arg0, %c0_i32, %c0_i32_0 : i32, i32, i32
  }
  func.func @transform_2(%arg0: i32) -> (i32, i32) {
    %c0_i32 = arith.constant 0 : i32
    %c0_i32_0 = arith.constant 0 : i32
    %c0_i32_1 = arith.constant 0 : i32
    return %c0_i32, %c0_i32_0 : i32, i32
  }
  func.func @transform_3(%arg0: i32) -> (i32, i32) {
    %c0_i32 = arith.constant 0 : i32
    %c0_i32_0 = arith.constant 0 : i32
    %c0_i32_1 = arith.constant 0 : i32
    return %c0_i32, %c0_i32_0 : i32, i32
  }
  func.func @transform_4(%arg0: i32) -> (i32, i32) {
    %c0_i32 = arith.constant 0 : i32
    %c0_i32_0 = arith.constant 0 : i32
    %c0_i32_1 = arith.constant 0 : i32
    return %c0_i32, %c0_i32_0 : i32, i32
  }
  func.func @transform_5(%arg0: i32) -> (i32, i32) {
    %c0_i32 = arith.constant 0 : i32
    %c0_i32_0 = arith.constant 0 : i32
    %c0_i32_1 = arith.constant 0 : i32
    return %c0_i32, %c0_i32_0 : i32, i32
  }
  func.func @transform_6(%arg0: i32) -> (i32, i32) {
    %c0_i32 = arith.constant 0 : i32
    %c0_i32_0 = arith.constant 0 : i32
    %c0_i32_1 = arith.constant 0 : i32
    return %c0_i32, %c0_i32_0 : i32, i32
  }
  func.func @transform_7(%arg0: i32) -> (i32, i32) {
    %c0_i32 = arith.constant 0 : i32
    %c0_i32_0 = arith.constant 0 : i32
    %c0_i32_1 = arith.constant 0 : i32
    return %c0_i32, %c0_i32_0 : i32, i32
  }
  func.func @transform_8(%arg0: i32) -> (i32, i32) {
    %c0_i32 = arith.constant 0 : i32
    %c0_i32_0 = arith.constant 0 : i32
    %c0_i32_1 = arith.constant 0 : i32
    return %c0_i32, %c0_i32_0 : i32, i32
  }
  func.func @transform_9(%arg0: i32) -> (i32, i32) {
    %c0_i32 = arith.constant 0 : i32
    %c0_i32_0 = arith.constant 0 : i32
    %c0_i32_1 = arith.constant 0 : i32
    return %c0_i32, %c0_i32_0 : i32, i32
  }
  func.func @transform_10(%arg0: i32) -> (i32, i32) {
    %c0_i32 = arith.constant 0 : i32
    %c0_i32_0 = arith.constant 0 : i32
    %c0_i32_1 = arith.constant 0 : i32
    return %c0_i32, %c0_i32_0 : i32, i32
  }
  func.func @transform_11(%arg0: i32) -> (i32, i32, i32) {
    %c0_i32 = arith.constant 0 : i32
    %c0_i32_0 = arith.constant 0 : i32
    %c0_i32_1 = arith.constant 0 : i32
    return %arg0, %c0_i32, %c0_i32_0 : i32, i32, i32
  }
}

</mosaic_0001>

<llo_original>
// kernel: tpu_custom_call.1
$region0: #{tpu_custom_call.1}
  #allocation0 [shape = 'u32[]', space=smem, size = 0x4, offset = 0x4, fixed_abs, tag = 'smem constant byte address 0x4 - core index']
  #allocation1 [shape = 'u32[144,128]{1,0:T(1,128)}', space=vmem, size = 0x12000, scoped, tag = 'internal scratch']
  #allocation2 [shape = 'f32[324,24]{1,0:T(8,128)}', space=vmem, size = 0x29000, scoped, tag = 'scratch operand']
  #allocation3 [shape = 'f32[256,24]{1,0:T(8,128)}', space=vmem, size = 0x20000, scoped, tag = 'scratch operand']
  %s0 = inlined_call_operand.vmem [shape: f32[2,324,4], index: 0, kind: input, shape index: {}]
  %s1 = inlined_call_operand.vmem [shape: f32[2,4,256], index: 1, kind: input, shape index: {}]
  %s2 = inlined_call_operand.vmem [shape: f32[4,24], index: 2, kind: input, shape index: {}]
  %s3 = inlined_call_operand.vmem [shape: f32[1,24], index: 3, kind: input, shape index: {}]
  %s4 = inlined_call_operand.vmem [shape: f32[1,24], index: 4, kind: input, shape index: {}]
  %s5 = inlined_call_operand.vmem [shape: f32[9,24], index: 5, kind: input, shape index: {}]
  %s6 = inlined_call_operand.vmem [shape: f32[1,24], index: 6, kind: input, shape index: {}]
  %s7 = inlined_call_operand.vmem [shape: f32[1,24], index: 7, kind: input, shape index: {}]
  %s8 = inlined_call_operand.vmem [shape: f32[4,24], index: 8, kind: input, shape index: {}]
  %s9 = inlined_call_operand.vmem [shape: f32[4,1], index: 9, kind: input, shape index: {}]
  %s10 = inlined_call_operand.vmem [shape: f32[4,1], index: 10, kind: input, shape index: {}]
  %s11 = inlined_call_operand.hbm [shape: f32[2,4,256], index: 11, kind: output, shape index: {}]
  %s12 = sld [smem:[#allocation0]]
  $region84: #{tpu_custom_call.1} parent=0
    _
  %s14 = ssub.s32 1, %s12
  %s15 = scalar_select 0, %s14, %s12
  $region1: #{tpu_custom_call.1} parent=0
    #allocation4 [shape = 'u8[8192]{0}', space=vmem, size = 0x2000, scoped, tag = 'output window, operand 0']
    #allocation5 [shape = 's32[2]{0}', space=sflag, size = 0x8, scoped, tag = 'scoped memory for tpu_custom_call.1']
    %16 = vsyncpa [#allocation5], 0
    %s17 = scalar_lea.sflag [#allocation5], 1
    %18 = vsyncpa %s17, 0
    loop: start=0, step=1, limit=4
    $region2: #{tpu_custom_call.1} parent=1 // loop_pre_header
      _
    $region3: #{tpu_custom_call.1} parent=1 // loop_header
      %s20 = sphi 0, %s24
      %p21 = scmp.ge.s32.totalorder %s20, 4
      %s30 = sphi 0, %s32
      %s33 = sphi 0, %s30
      %s34 = sphi 0, %s33
      %s50 = sphi 0, %s34
      %s56 = sphi 0, %s58
      %s59 = sphi 0, %s56
      %s60 = sphi 0, %s59
      %s76 = sphi 0, %s60
      %s80 = sphi 0, %s80
      %s82 = sphi 0, %s80
      %s83 = sphi 0, %s82
      %s97 = sphi 0, %s83
      %s101 = sphi 0, %s101
      %s103 = sphi 0, %s101
      %s104 = sphi 0, %s103
      %s118 = sphi 0, %s104
      %s122 = sphi 0, %s122
      %s124 = sphi 0, %s122
      %s125 = sphi 0, %s124
      %s139 = sphi 0, %s125
      %s143 = sphi 0, %s143
      %s145 = sphi 0, %s143
      %s146 = sphi 0, %s145
      %s160 = sphi 0, %s146
      %s164 = sphi 0, %s164
      %s166 = sphi 0, %s164
      %s167 = sphi 0, %s166
      %s181 = sphi 0, %s167
      %s185 = sphi 0, %s185
      %s187 = sphi 0, %s185
      %s188 = sphi 0, %s187
      %s202 = sphi 0, %s188
      %s206 = sphi 0, %s206
      %s208 = sphi 0, %s206
      %s209 = sphi 0, %s208
      %s223 = sphi 0, %s209
      %s227 = sphi 0, %s227
      %s229 = sphi 0, %s227
      %s230 = sphi 0, %s229
      %s244 = sphi 0, %s230
      %s248 = sphi 0, %s248
      %s250 = sphi 0, %s248
      %s251 = sphi 0, %s250
      %s265 = sphi 0, %s251
      %s271 = sphi 0, %s273
      %s274 = sphi 0, %s271
      %s275 = sphi 0, %s274
      %s291 = sphi 0, %s275
    $region4: #{tpu_custom_call.1} parent=1 // loop_header_branch
      %23 = sbr.rel (%p21) target = $region8
    $region5: #{tpu_custom_call.1} parent=1 // loop_body
      %s25 = ssub.s32 %s20, 1
      %s26 = ssub.s32 %s20, 2
      %s27 = sadd.s32 %s20, 1
      %s28 = ssub.s32 %s20, %s27
      %p29 = scmp.eq.s32.totalorder %s28, 0
      %s31 = sadd.s32 %s30, 1
      %s32 = scalar_select %p29, %s30, %s31
      %p35 = pneg %p29
      %p36 = scmp.eq.s32.totalorder %s20, 1
      %p37 = por %p35, %p36
      %p38 = scmp.ne.s32.totalorder %s30, %s33
      %p39 = scmp.eq.s32.totalorder %s20, 0
      %p40 = por %p38, %p39
      %p41 = scmp.ne.s32.totalorder %s30, %s33
      %p42 = scmp.eq.s32.totalorder %s25, 1
      %p43 = por %p41, %p42
      %p44 = scmp.ne.s32.totalorder %s33, %s34
      %p45 = scmp.eq.s32.totalorder %s25, 0
      %p46 = por %p44, %p45
      %p47 = scmp.ne.s32.totalorder %s33, %s34
      %p48 = scmp.eq.s32.totalorder %s26, 1
      %p49 = por %p47, %p48
      %p51 = scmp.ne.s32.totalorder %s34, %s50
      %p52 = scmp.eq.s32.totalorder %s26, 0
      %p53 = por %p51, %p52
      %s54 = ssub.s32 %s20, %s27
      %p55 = scmp.eq.s32.totalorder %s54, 0
      %s57 = sadd.s32 %s56, 1
      %s58 = scalar_select %p55, %s56, %s57
      %p61 = pneg %p55
      %p62 = scmp.eq.s32.totalorder %s20, 1
      %p63 = por %p61, %p62
      %p64 = scmp.ne.s32.totalorder %s56, %s59
      %p65 = scmp.eq.s32.totalorder %s20, 0
      %p66 = por %p64, %p65
      %p67 = scmp.ne.s32.totalorder %s56, %s59
      %p68 = scmp.eq.s32.totalorder %s25, 1
      %p69 = por %p67, %p68
      %p70 = scmp.ne.s32.totalorder %s59, %s60
      %p71 = scmp.eq.s32.totalorder %s25, 0
      %p72 = por %p70, %p71
      %p73 = scmp.ne.s32.totalorder %s59, %s60
      %p74 = scmp.eq.s32.totalorder %s26, 1
      %p75 = por %p73, %p74
      %p77 = scmp.ne.s32.totalorder %s60, %s76
      %p78 = scmp.eq.s32.totalorder %s26, 0
      %p79 = por %p77, %p78
      %s81 = sadd.s32 %s80, 1
      %p84 = scmp.eq.s32.totalorder %s20, 1
      %p85 = scmp.ne.s32.totalorder %s80, %s82
      %p86 = scmp.eq.s32.totalorder %s20, 0
      %p87 = por %p85, %p86
      %p88 = scmp.ne.s32.totalorder %s80, %s82
      %p89 = scmp.eq.s32.totalorder %s25, 1
      %p90 = por %p88, %p89
      %p91 = scmp.ne.s32.totalorder %s82, %s83
      %p92 = scmp.eq.s32.totalorder %s25, 0
      %p93 = por %p91, %p92
      %p94 = scmp.ne.s32.totalorder %s82, %s83
      %p95 = scmp.eq.s32.totalorder %s26, 1
      %p96 = por %p94, %p95
      %p98 = scmp.ne.s32.totalorder %s83, %s97
      %p99 = scmp.eq.s32.totalorder %s26, 0
      %p100 = por %p98, %p99
      %s102 = sadd.s32 %s101, 1
      %p105 = scmp.eq.s32.totalorder %s20, 1
      %p106 = scmp.ne.s32.totalorder %s101, %s103
      %p107 = scmp.eq.s32.totalorder %s20, 0
      %p108 = por %p106, %p107
      %p109 = scmp.ne.s32.totalorder %s101, %s103
      %p110 = scmp.eq.s32.totalorder %s25, 1
      %p111 = por %p109, %p110
      %p112 = scmp.ne.s32.totalorder %s103, %s104
      %p113 = scmp.eq.s32.totalorder %s25, 0
      %p114 = por %p112, %p113
      %p115 = scmp.ne.s32.totalorder %s103, %s104
      %p116 = scmp.eq.s32.totalorder %s26, 1
      %p117 = por %p115, %p116
      %p119 = scmp.ne.s32.totalorder %s104, %s118
      %p120 = scmp.eq.s32.totalorder %s26, 0
      %p121 = por %p119, %p120
      %s123 = sadd.s32 %s122, 1
      %p126 = scmp.eq.s32.totalorder %s20, 1
      %p127 = scmp.ne.s32.totalorder %s122, %s124
      %p128 = scmp.eq.s32.totalorder %s20, 0
      %p129 = por %p127, %p128
      %p130 = scmp.ne.s32.totalorder %s122, %s124
      %p131 = scmp.eq.s32.totalorder %s25, 1
      %p132 = por %p130, %p131
      %p133 = scmp.ne.s32.totalorder %s124, %s125
      %p134 = scmp.eq.s32.totalorder %s25, 0
      %p135 = por %p133, %p134
      %p136 = scmp.ne.s32.totalorder %s124, %s125
      %p137 = scmp.eq.s32.totalorder %s26, 1
      %p138 = por %p136, %p137
      %p140 = scmp.ne.s32.totalorder %s125, %s139
      %p141 = scmp.eq.s32.totalorder %s26, 0
      %p142 = por %p140, %p141
      %s144 = sadd.s32 %s143, 1
      %p147 = scmp.eq.s32.totalorder %s20, 1
      %p148 = scmp.ne.s32.totalorder %s143, %s145
      %p149 = scmp.eq.s32.totalorder %s20, 0
      %p150 = por %p148, %p149
      %p151 = scmp.ne.s32.totalorder %s143, %s145
      %p152 = scmp.eq.s32.totalorder %s25, 1
      %p153 = por %p151, %p152
      %p154 = scmp.ne.s32.totalorder %s145, %s146
      %p155 = scmp.eq.s32.totalorder %s25, 0
      %p156 = por %p154, %p155
      %p157 = scmp.ne.s32.totalorder %s145, %s146
      %p158 = scmp.eq.s32.totalorder %s26, 1
      %p159 = por %p157, %p158
      %p161 = scmp.ne.s32.totalorder %s146, %s160
      %p162 = scmp.eq.s32.totalorder %s26, 0
      %p163 = por %p161, %p162
      %s165 = sadd.s32 %s164, 1
      %p168 = scmp.eq.s32.totalorder %s20, 1
      %p169 = scmp.ne.s32.totalorder %s164, %s166
      %p170 = scmp.eq.s32.totalorder %s20, 0
      %p171 = por %p169, %p170
      %p172 = scmp.ne.s32.totalorder %s164, %s166
      %p173 = scmp.eq.s32.totalorder %s25, 1
      %p174 = por %p172, %p173
      %p175 = scmp.ne.s32.totalorder %s166, %s167
      %p176 = scmp.eq.s32.totalorder %s25, 0
      %p177 = por %p175, %p176
      %p178 = scmp.ne.s32.totalorder %s166, %s167
      %p179 = scmp.eq.s32.totalorder %s26, 1
      %p180 = por %p178, %p179
      %p182 = scmp.ne.s32.totalorder %s167, %s181
      %p183 = scmp.eq.s32.totalorder %s26, 0
      %p184 = por %p182, %p183
      %s186 = sadd.s32 %s185, 1
      %p189 = scmp.eq.s32.totalorder %s20, 1
      %p190 = scmp.ne.s32.totalorder %s185, %s187
      %p191 = scmp.eq.s32.totalorder %s20, 0
      %p192 = por %p190, %p191
      %p193 = scmp.ne.s32.totalorder %s185, %s187
      %p194 = scmp.eq.s32.totalorder %s25, 1
      %p195 = por %p193, %p194
      %p196 = scmp.ne.s32.totalorder %s187, %s188
      %p197 = scmp.eq.s32.totalorder %s25, 0
      %p198 = por %p196, %p197
      %p199 = scmp.ne.s32.totalorder %s187, %s188
      %p200 = scmp.eq.s32.totalorder %s26, 1
      %p201 = por %p199, %p200
      %p203 = scmp.ne.s32.totalorder %s188, %s202
      %p204 = scmp.eq.s32.totalorder %s26, 0
      %p205 = por %p203, %p204
      %s207 = sadd.s32 %s206, 1
      %p210 = scmp.eq.s32.totalorder %s20, 1
      %p211 = scmp.ne.s32.totalorder %s206, %s208
      %p212 = scmp.eq.s32.totalorder %s20, 0
      %p213 = por %p211, %p212
      %p214 = scmp.ne.s32.totalorder %s206, %s208
      %p215 = scmp.eq.s32.totalorder %s25, 1
      %p216 = por %p214, %p215
      %p217 = scmp.ne.s32.totalorder %s208, %s209
      %p218 = scmp.eq.s32.totalorder %s25, 0
      %p219 = por %p217, %p218
      %p220 = scmp.ne.s32.totalorder %s208, %s209
      %p221 = scmp.eq.s32.totalorder %s26, 1
      %p222 = por %p220, %p221
      %p224 = scmp.ne.s32.totalorder %s209, %s223
      %p225 = scmp.eq.s32.totalorder %s26, 0
      %p226 = por %p224, %p225
      %s228 = sadd.s32 %s227, 1
      %p231 = scmp.eq.s32.totalorder %s20, 1
      %p232 = scmp.ne.s32.totalorder %s227, %s229
      %p233 = scmp.eq.s32.totalorder %s20, 0
      %p234 = por %p232, %p233
      %p235 = scmp.ne.s32.totalorder %s227, %s229
      %p236 = scmp.eq.s32.totalorder %s25, 1
      %p237 = por %p235, %p236
      %p238 = scmp.ne.s32.totalorder %s229, %s230
      %p239 = scmp.eq.s32.totalorder %s25, 0
      %p240 = por %p238, %p239
      %p241 = scmp.ne.s32.totalorder %s229, %s230
      %p242 = scmp.eq.s32.totalorder %s26, 1
      %p243 = por %p241, %p242
      %p245 = scmp.ne.s32.totalorder %s230, %s244
      %p246 = scmp.eq.s32.totalorder %s26, 0
      %p247 = por %p245, %p246
      %s249 = sadd.s32 %s248, 1
      %p252 = scmp.eq.s32.totalorder %s20, 1
      %p253 = scmp.ne.s32.totalorder %s248, %s250
      %p254 = scmp.eq.s32.totalorder %s20, 0
      %p255 = por %p253, %p254
      %p256 = scmp.ne.s32.totalorder %s248, %s250
      %p257 = scmp.eq.s32.totalorder %s25, 1
      %p258 = por %p256, %p257
      %p259 = scmp.ne.s32.totalorder %s250, %s251
      %p260 = scmp.eq.s32.totalorder %s25, 0
      %p261 = por %p259, %p260
      %p262 = scmp.ne.s32.totalorder %s250, %s251
      %p263 = scmp.eq.s32.totalorder %s26, 1
      %p264 = por %p262, %p263
      %p266 = scmp.ne.s32.totalorder %s251, %s265
      %p267 = scmp.eq.s32.totalorder %s26, 0
      %p268 = por %p266, %p267
      %s269 = ssub.s32 %s20, %s27
      %p270 = scmp.eq.s32.totalorder %s269, 0
      %s272 = sadd.s32 %s271, 1
      %s273 = scalar_select %p270, %s271, %s272
      %p276 = pneg %p270
      %p277 = scmp.eq.s32.totalorder %s20, 1
      %p278 = por %p276, %p277
      %p279 = scmp.ne.s32.totalorder %s271, %s274
      %p280 = scmp.eq.s32.totalorder %s20, 0
      %p281 = por %p279, %p280
      %p282 = scmp.ne.s32.totalorder %s271, %s274
      %p283 = scmp.eq.s32.totalorder %s25, 1
      %p284 = por %p282, %p283
      %p285 = scmp.ne.s32.totalorder %s274, %s275
      %p286 = scmp.eq.s32.totalorder %s25, 0
      %p287 = por %p285, %p286
      %p288 = scmp.ne.s32.totalorder %s274, %s275
      %p289 = scmp.eq.s32.totalorder %s26, 1
      %p290 = por %p288, %p289
      %p292 = scmp.ne.s32.totalorder %s275, %s291
      %p293 = scmp.eq.s32.totalorder %s26, 0
      %p294 = por %p292, %p293
      %p295 = scmp.le.s32.totalorder 1, %s20
      %p296 = scmp.lt.s32.totalorder %s20, 3
      %p297 = pnand %p295, %p296
      %p298 = pneg %p297
      // Predicated region
      $region9: #{tpu_custom_call.1} parent=5 // pred_check
        _
      $region10: #{tpu_custom_call.1} parent=5 // pred_check_branch
        %300 = sbr.rel (%p297) target = $region12
      $region11: #{tpu_custom_call.1} parent=5 // pred_region
        %s301 = ssub.s32 %s20, 1
        // Predicated region
        $region13: #{tpu_custom_call.1} parent=11 // pred_check
          %p302 = pneg %p93
        $region14: #{tpu_custom_call.1} parent=11 // pred_check_branch
          %304 = sbr.rel (%p302) target = $region16
        $region15: #{tpu_custom_call.1} parent=11 // pred_region
          _
        $region16: #{tpu_custom_call.1} parent=11 // pred_fallthru
          _
        // Predicated region
        $region17: #{tpu_custom_call.1} parent=11 // pred_check
          %p305 = pneg %p114
        $region18: #{tpu_custom_call.1} parent=11 // pred_check_branch
          %307 = sbr.rel (%p305) target = $region20
        $region19: #{tpu_custom_call.1} parent=11 // pred_region
          _
        $region20: #{tpu_custom_call.1} parent=11 // pred_fallthru
          _
        // Predicated region
        $region21: #{tpu_custom_call.1} parent=11 // pred_check
          %p308 = pneg %p135
        $region22: #{tpu_custom_call.1} parent=11 // pred_check_branch
          %310 = sbr.rel (%p308) target = $region24
        $region23: #{tpu_custom_call.1} parent=11 // pred_region
          _
        $region24: #{tpu_custom_call.1} parent=11 // pred_fallthru
          _
        // Predicated region
        $region25: #{tpu_custom_call.1} parent=11 // pred_check
          %p311 = pneg %p156
        $region26: #{tpu_custom_call.1} parent=11 // pred_check_branch
          %313 = sbr.rel (%p311) target = $region28
        $region27: #{tpu_custom_call.1} parent=11 // pred_region
          _
        $region28: #{tpu_custom_call.1} parent=11 // pred_fallthru
          _
        // Predicated region
        $region29: #{tpu_custom_call.1} parent=11 // pred_check
          %p314 = pneg %p177
        $region30: #{tpu_custom_call.1} parent=11 // pred_check_branch
          %316 = sbr.rel (%p314) target = $region32
        $region31: #{tpu_custom_call.1} parent=11 // pred_region
          _
        $region32: #{tpu_custom_call.1} parent=11 // pred_fallthru
          _
        // Predicated region
        $region33: #{tpu_custom_call.1} parent=11 // pred_check
          %p317 = pneg %p198
        $region34: #{tpu_custom_call.1} parent=11 // pred_check_branch
          %319 = sbr.rel (%p317) target = $region36
        $region35: #{tpu_custom_call.1} parent=11 // pred_region
          _
        $region36: #{tpu_custom_call.1} parent=11 // pred_fallthru
          _
        // Predicated region
        $region37: #{tpu_custom_call.1} parent=11 // pred_check
          %p320 = pneg %p219
        $region38: #{tpu_custom_call.1} parent=11 // pred_check_branch
          %322 = sbr.rel (%p320) target = $region40
        $region39: #{tpu_custom_call.1} parent=11 // pred_region
          _
        $region40: #{tpu_custom_call.1} parent=11 // pred_fallthru
          _
        // Predicated region
        $region41: #{tpu_custom_call.1} parent=11 // pred_check
          %p323 = pneg %p240
        $region42: #{tpu_custom_call.1} parent=11 // pred_check_branch
          %325 = sbr.rel (%p323) target = $region44
        $region43: #{tpu_custom_call.1} parent=11 // pred_region
          _
        $region44: #{tpu_custom_call.1} parent=11 // pred_fallthru
          _
        // Predicated region
        $region45: #{tpu_custom_call.1} parent=11 // pred_check
          %p326 = pneg %p261
        $region46: #{tpu_custom_call.1} parent=11 // pred_check_branch
          %328 = sbr.rel (%p326) target = $region48
        $region47: #{tpu_custom_call.1} parent=11 // pred_region
          _
        $region48: #{tpu_custom_call.1} parent=11 // pred_fallthru
          _
      $region12: #{tpu_custom_call.1} parent=5 // pred_fallthru
        _
      %p329 = scmp.lt.s32.totalorder %s20, 2
      // Predicated region
      $region49: #{tpu_custom_call.1} parent=5 // pred_check
        %p330 = pneg %p329
      $region50: #{tpu_custom_call.1} parent=5 // pred_check_branch
        %332 = sbr.rel (%p330) target = $region52
      $region51: #{tpu_custom_call.1} parent=5 // pred_region
        // Predicated region
        $region53: #{tpu_custom_call.1} parent=51 // pred_check
          %p333 = pneg %p40
        $region54: #{tpu_custom_call.1} parent=51 // pred_check_branch
          %335 = sbr.rel (%p333) target = $region56
        $region55: #{tpu_custom_call.1} parent=51 // pred_region
          %p336 = scmp.lt.s32.totalorder %s20, 1
          %s337 = scalar_select %p336, %s20, 1
          %s338 = smul.addr %s337, 41
          %s339 = smul.addr %s338, 8
          %s340 = scalar_lea.vmem %s0, %s339
        $region56: #{tpu_custom_call.1} parent=51 // pred_fallthru
          _
        // Predicated region
        $region57: #{tpu_custom_call.1} parent=51 // pred_check
          %p341 = pneg %p66
        $region58: #{tpu_custom_call.1} parent=51 // pred_check_branch
          %343 = sbr.rel (%p341) target = $region60
        $region59: #{tpu_custom_call.1} parent=51 // pred_region
          %p344 = scmp.lt.s32.totalorder %s20, 1
          %s345 = scalar_select %p344, %s20, 1
          %s346 = smul.addr %s345, 2
          %s347 = smul.addr %s346, 4
          %s348 = scalar_lea.vmem %s1, %s347
        $region60: #{tpu_custom_call.1} parent=51 // pred_fallthru
          _
      $region52: #{tpu_custom_call.1} parent=5 // pred_fallthru
        _
      %p349 = scmp.le.s32.totalorder 1, %s20
      %p350 = scmp.lt.s32.totalorder %s20, 3
      %p351 = pnand %p349, %p350
      %p352 = pneg %p351
      // Predicated region
      $region61: #{tpu_custom_call.1} parent=5 // pred_check
        _
      $region62: #{tpu_custom_call.1} parent=5 // pred_check_branch
        %354 = sbr.rel (%p351) target = $region64
      $region63: #{tpu_custom_call.1} parent=5 // pred_region
        %s355 = ssub.s32 %s20, 1
        %p356 = scmp.lt.s32.totalorder %s25, 1
        %s357 = scalar_select %p356, %s25, 1
        %s358 = smul.addr %s357, 41
        %s359 = smul.addr %s358, 8
        %s360 = scalar_lea.vmem %s0, %s359
        %p361 = pneg %p46
        %p362 = pneg %p43
        %p363 = scmp.lt.s32.totalorder %s25, 1
        %s364 = scalar_select %p363, %s25, 1
        %s365 = smul.addr %s364, 2
        %s366 = smul.addr %s365, 4
        %s367 = scalar_lea.vmem %s1, %s366
        %p368 = pneg %p72
        %p369 = pneg %p69
        %p370 = pneg %p93
        %p371 = pneg %p90
        %p372 = pneg %p114
        %p373 = pneg %p111
        %p374 = pneg %p135
        %p375 = pneg %p132
        %p376 = pneg %p156
        %p377 = pneg %p153
        %p378 = pneg %p177
        %p379 = pneg %p174
        %p380 = pneg %p198
        %p381 = pneg %p195
        %p382 = pneg %p219
        %p383 = pneg %p216
        %p384 = pneg %p240
        %p385 = pneg %p237
        %p386 = pneg %p261
        %p387 = pneg %p258
        %p388 = pneg %p287
        %p389 = pneg %p284
        %s390 = sand.u32 %s274, 1
        %s391 = scalar_lea.sflag [#allocation5], %s390
        %s392 = sand.u32 %s274, 1
        %s393 = smul.addr %s392, 8
        %s394 = scalar_lea.vmem [#allocation4], %s393
        %p395 = scmp.lt.s32.totalorder %s25, 1
        %s396 = scalar_select %p395, %s25, 1
        %s397 = smul.addr %s396, 41
        %s398 = smul.addr %s397, 8
        %s399 = scalar_lea.vmem %s0, %s398
        %p400 = scmp.lt.s32.totalorder %s25, 1
        %s401 = scalar_select %p400, %s25, 1
        %s402 = smul.addr %s401, 2
        %s403 = smul.addr %s402, 4
        %s404 = scalar_lea.vmem %s1, %s403
        %v405 = vld [vmem:[%s399] sm:$0xff]
        %v406 = vld [vmem:[%s399 + $0x8] sm:$0xff]
        %v407 = vld [vmem:[%s399 + $0x10] sm:$0xff]
        %v408 = vld [vmem:[%s399 + $0x18] sm:$0xff]
        %v409 = vld [vmem:[%s399 + $0x20] sm:$0xff]
        %v410 = vld [vmem:[%s399 + $0x28] sm:$0xff]
        %v411 = vld [vmem:[%s399 + $0x30] sm:$0xff]
        %v412 = vld [vmem:[%s399 + $0x38] sm:$0xff]
        %v413 = vld [vmem:[%s399 + $0x40] sm:$0xff]
        %v414 = vld [vmem:[%s399 + $0x48] sm:$0xff]
        %v415 = vld [vmem:[%s399 + $0x50] sm:$0xff]
        %v416 = vld [vmem:[%s399 + $0x58] sm:$0xff]
        %v417 = vld [vmem:[%s399 + $0x60] sm:$0xff]
        %v418 = vld [vmem:[%s399 + $0x68] sm:$0xff]
        %v419 = vld [vmem:[%s399 + $0x70] sm:$0xff]
        %v420 = vld [vmem:[%s399 + $0x78] sm:$0xff]
        %v421 = vld [vmem:[%s399 + $0x80] sm:$0xff]
        %v422 = vld [vmem:[%s399 + $0x88] sm:$0xff]
        %v423 = vld [vmem:[%s399 + $0x90] sm:$0xff]
        %v424 = vld [vmem:[%s399 + $0x98] sm:$0xff]
        %v425 = vld [vmem:[%s399 + $0xa0] sm:$0xff]
        %v426 = vld [vmem:[%s399 + $0xa8] sm:$0xff]
        %v427 = vld [vmem:[%s399 + $0xb0] sm:$0xff]
        %v428 = vld [vmem:[%s399 + $0xb8] sm:$0xff]
        %v429 = vld [vmem:[%s399 + $0xc0] sm:$0xff]
        %v430 = vld [vmem:[%s399 + $0xc8] sm:$0xff]
        %v431 = vld [vmem:[%s399 + $0xd0] sm:$0xff]
        %v432 = vld [vmem:[%s399 + $0xd8] sm:$0xff]
        %v433 = vld [vmem:[%s399 + $0xe0] sm:$0xff]
        %v434 = vld [vmem:[%s399 + $0xe8] sm:$0xff]
        %v435 = vld [vmem:[%s399 + $0xf0] sm:$0xff]
        %v436 = vld [vmem:[%s399 + $0xf8] sm:$0xff]
        %v437 = vld [vmem:[%s399 + $0x100] sm:$0xff]
        %v438 = vld [vmem:[%s399 + $0x108] sm:$0xff]
        %v439 = vld [vmem:[%s399 + $0x110] sm:$0xff]
        %v440 = vld [vmem:[%s399 + $0x118] sm:$0xff]
        %v441 = vld [vmem:[%s399 + $0x120] sm:$0xff]
        %v442 = vld [vmem:[%s399 + $0x128] sm:$0xff]
        %v443 = vld [vmem:[%s399 + $0x130] sm:$0xff]
        %v444 = vld [vmem:[%s399 + $0x138] sm:$0xff]
        %v445 = vld [vmem:[%s399 + $0x140] sm:$0xf]
        %v446 = vld [vmem:[%s2] sm:$0xf]
        %vm447 = vcmask 31744
        %v449 = vsel %vm447, %v405, 0
        %v452 = vsel %vm447, %v406, 0
        %v455 = vsel %vm447, %v407, 0
        %v458 = vsel %vm447, %v408, 0
        %v461 = vsel %vm447, %v409, 0
        %v464 = vsel %vm447, %v410, 0
        %v467 = vsel %vm447, %v411, 0
        %v470 = vsel %vm447, %v412, 0
        %v473 = vsel %vm447, %v413, 0
        %v476 = vsel %vm447, %v414, 0
        %v479 = vsel %vm447, %v415, 0
        %v482 = vsel %vm447, %v416, 0
        %v485 = vsel %vm447, %v417, 0
        %v488 = vsel %vm447, %v418, 0
        %v491 = vsel %vm447, %v419, 0
        %v494 = vsel %vm447, %v420, 0
        %v497 = vsel %vm447, %v421, 0
        %v500 = vsel %vm447, %v422, 0
        %v503 = vsel %vm447, %v423, 0
        %v506 = vsel %vm447, %v424, 0
        %v509 = vsel %vm447, %v425, 0
        %v512 = vsel %vm447, %v426, 0
        %v515 = vsel %vm447, %v427, 0
        %v518 = vsel %vm447, %v428, 0
        %v521 = vsel %vm447, %v429, 0
        %v524 = vsel %vm447, %v430, 0
        %v527 = vsel %vm447, %v431, 0
        %v530 = vsel %vm447, %v432, 0
        %v533 = vsel %vm447, %v433, 0
        %v536 = vsel %vm447, %v434, 0
        %v539 = vsel %vm447, %v435, 0
        %v542 = vsel %vm447, %v436, 0
        %v545 = vsel %vm447, %v437, 0
        %v548 = vsel %vm447, %v438, 0
        %v551 = vsel %vm447, %v439, 0
        %v554 = vsel %vm447, %v440, 0
        %v557 = vsel %vm447, %v441, 0
        %v560 = vsel %vm447, %v442, 0
        %v563 = vsel %vm447, %v443, 0
        %v566 = vsel %vm447, %v444, 0
        %v569 = vsel %vm447, %v445, 0
        %vm571 = vcmask 1043456
        %v573 = vsel %vm571, %v446, 0
        %575 = vmatprep.subr.mxu0 0.0
        %576 = vmatpush1.msra.mxu0 %v573
        %577 = vmatprep.subr.mxu0 0.0
        %578 = vmatpush1.msra.mxu0 0.0
        %579 = vmatprep.subr.mxu0 0.0
        %580 = vmatpush1.msra.mxu0 0.0
        %581 = vmatprep.subr.mxu0 0.0
        %582 = vmatpush1.msra.mxu0 0.0
        %583 = vmatprep.subr.mxu0 0.0
        %584 = vmatpush1.msra.mxu0 0.0
        %585 = vmatprep.subr.mxu0 0.0
        %586 = vmatpush1.msra.mxu0 0.0
        %587 = vmatprep.subr.mxu0 0.0
        %588 = vmatpush1.msra.mxu0 0.0
        %589 = vmatprep.subr.mxu0 0.0
        %590 = vmatpush1.msra.mxu0 0.0
        %591 = vmatprep.subr.mxu0 0.0
        %592 = vmatpush1.msra.mxu0 0.0
        %593 = vmatprep.subr.mxu0 0.0
        %594 = vmatpush1.msra.mxu0 0.0
        %595 = vmatprep.subr.mxu0 0.0
        %596 = vmatpush1.msra.mxu0 0.0
        %597 = vmatprep.subr.mxu0 0.0
        %598 = vmatpush1.msra.mxu0 0.0
        %599 = vmatprep.subr.mxu0 0.0
        %600 = vmatpush1.msra.mxu0 0.0
        %601 = vmatprep.subr.mxu0 0.0
        %602 = vmatpush1.msra.mxu0 0.0
        %603 = vmatprep.subr.mxu0 0.0
        %604 = vmatpush1.msra.mxu0 0.0
        %605 = vmatprep.subr.mxu0 0.0
        %606 = vmatpush1.msra.mxu0 0.0
        %607 = vmatprep.subr.mxu0 0.0
        %608 = vmatpush1.msra.mxu0 0.0
        %609 = vmatprep.subr.mxu0 0.0
        %610 = vmatpush1.msra.mxu0 0.0
        %611 = vmatprep.subr.mxu0 0.0
        %612 = vmatpush1.msra.mxu0 0.0
        %613 = vmatprep.subr.mxu0 0.0
        %614 = vmatpush1.msra.mxu0 0.0
        %615 = vmatprep.subr.mxu0 0.0
        %616 = vmatpush1.msra.mxu0 0.0
        %617 = vmatprep.subr.mxu0 0.0
        %618 = vmatpush1.msra.mxu0 0.0
        %619 = vmatprep.subr.mxu0 0.0
        %620 = vmatpush1.msra.mxu0 0.0
        %621 = vmatprep.subr.mxu0 0.0
        %622 = vmatpush1.msra.mxu0 0.0
        %623 = vmatprep.subr.mxu0 0.0
        %624 = vmatpush1.msra.mxu0 0.0
        %625 = vmatprep.subr.mxu0 0.0
        %626 = vmatpush1.msra.mxu0 0.0
        %627 = vmatprep.subr.mxu0 0.0
        %628 = vmatpush1.msra.mxu0 0.0
        %629 = vmatprep.subr.mxu0 0.0
        %630 = vmatpush1.msra.mxu0 0.0
        %631 = vmatprep.subr.mxu0 0.0
        %632 = vmatpush1.msra.mxu0 0.0
        %633 = vmatprep.subr.mxu0 0.0
        %634 = vmatpush1.msra.mxu0 0.0
        %635 = vmatprep.subr.mxu0 0.0
        %636 = vmatpush1.msra.mxu0 0.0
        %637 = vmatprep.subr.mxu0 0.0
        %638 = vmatpush1.msra.mxu0 0.0
        %639 = vmatprep.mubr.f32.mxu0 0.0
        %640 = vmatmul.mubr.f32.gmra.mrb[0].mxu0 %v449
        %v641 = vpop.f32.mrb[0].mxu0
        %v642 = vadd.f32 0.0, %v641
        %v643 = vpop.f32.mrb[0].mxu0
        %644 = vmatprep.mubr.f32.mxu0 0.0
        %645 = vmatmul.mubr.f32.gmra.mrb[0].mxu0 %v452
        %v646 = vpop.f32.mrb[0].mxu0
        %v647 = vadd.f32 0.0, %v646
        %v648 = vpop.f32.mrb[0].mxu0
        %649 = vmatprep.mubr.f32.mxu0 0.0
        %650 = vmatmul.mubr.f32.gmra.mrb[0].mxu0 %v455
        %v651 = vpop.f32.mrb[0].mxu0
        %v652 = vadd.f32 0.0, %v651
        %v653 = vpop.f32.mrb[0].mxu0
        %654 = vmatprep.mubr.f32.mxu0 0.0
        %655 = vmatmul.mubr.f32.gmra.mrb[0].mxu0 %v458
        %v656 = vpop.f32.mrb[0].mxu0
        %v657 = vadd.f32 0.0, %v656
        %v658 = vpop.f32.mrb[0].mxu0
        %659 = vmatprep.mubr.f32.mxu0 0.0
        %660 = vmatmul.mubr.f32.gmra.mrb[0].mxu0 %v461
        %v661 = vpop.f32.mrb[0].mxu0
        %v662 = vadd.f32 0.0, %v661
        %v663 = vpop.f32.mrb[0].mxu0
        %664 = vmatprep.mubr.f32.mxu0 0.0
        %665 = vmatmul.mubr.f32.gmra.mrb[0].mxu0 %v464
        %v666 = vpop.f32.mrb[0].mxu0
        %v667 = vadd.f32 0.0, %v666
        %v668 = vpop.f32.mrb[0].mxu0
        %669 = vmatprep.mubr.f32.mxu0 0.0
        %670 = vmatmul.mubr.f32.gmra.mrb[0].mxu0 %v467
        %v671 = vpop.f32.mrb[0].mxu0
        %v672 = vadd.f32 0.0, %v671
        %v673 = vpop.f32.mrb[0].mxu0
        %674 = vmatprep.mubr.f32.mxu0 0.0
        %675 = vmatmul.mubr.f32.gmra.mrb[0].mxu0 %v470
        %v676 = vpop.f32.mrb[0].mxu0
        %v677 = vadd.f32 0.0, %v676
        %v678 = vpop.f32.mrb[0].mxu0
        %679 = vmatprep.mubr.f32.mxu0 0.0
        %680 = vmatmul.mubr.f32.gmra.mrb[0].mxu0 %v473
        %v681 = vpop.f32.mrb[0].mxu0
        %v682 = vadd.f32 0.0, %v681
        %v683 = vpop.f32.mrb[0].mxu0
        %684 = vmatprep.mubr.f32.mxu0 0.0
        %685 = vmatmul.mubr.f32.gmra.mrb[0].mxu0 %v476
        %v686 = vpop.f32.mrb[0].mxu0
        %v687 = vadd.f32 0.0, %v686
        %v688 = vpop.f32.mrb[0].mxu0
        %689 = vmatprep.mubr.f32.mxu0 0.0
        %690 = vmatmul.mubr.f32.gmra.mrb[0].mxu0 %v479
        %v691 = vpop.f32.mrb[0].mxu0
        %v692 = vadd.f32 0.0, %v691
        %v693 = vpop.f32.mrb[0].mxu0
        %694 = vmatprep.mubr.f32.mxu0 0.0
        %695 = vmatmul.mubr.f32.gmra.mrb[0].mxu0 %v482
        %v696 = vpop.f32.mrb[0].mxu0
        %v697 = vadd.f32 0.0, %v696
        %v698 = vpop.f32.mrb[0].mxu0
        %699 = vmatprep.mubr.f32.mxu0 0.0
        %700 = vmatmul.mubr.f32.gmra.mrb[0].mxu0 %v485
        %v701 = vpop.f32.mrb[0].mxu0
        %v702 = vadd.f32 0.0, %v701
        %v703 = vpop.f32.mrb[0].mxu0
        %704 = vmatprep.mubr.f32.mxu0 0.0
        %705 = vmatmul.mubr.f32.gmra.mrb[0].mxu0 %v488
        %v706 = vpop.f32.mrb[0].mxu0
        %v707 = vadd.f32 0.0, %v706
        %v708 = vpop.f32.mrb[0].mxu0
        %709 = vmatprep.mubr.f32.mxu0 0.0
        %710 = vmatmul.mubr.f32.gmra.mrb[0].mxu0 %v491
        %v711 = vpop.f32.mrb[0].mxu0
        %v712 = vadd.f32 0.0, %v711
        %v713 = vpop.f32.mrb[0].mxu0
        %714 = vmatprep.mubr.f32.mxu0 0.0
        %715 = vmatmul.mubr.f32.gmra.mrb[0].mxu0 %v494
        %v716 = vpop.f32.mrb[0].mxu0
        %v717 = vadd.f32 0.0, %v716
        %v718 = vpop.f32.mrb[0].mxu0
        %719 = vmatprep.mubr.f32.mxu0 0.0
        %720 = vmatmul.mubr.f32.gmra.mrb[0].mxu0 %v497
        %v721 = vpop.f32.mrb[0].mxu0
        %v722 = vadd.f32 0.0, %v721
        %v723 = vpop.f32.mrb[0].mxu0
        %724 = vmatprep.mubr.f32.mxu0 0.0
        %725 = vmatmul.mubr.f32.gmra.mrb[0].mxu0 %v500
        %v726 = vpop.f32.mrb[0].mxu0
        %v727 = vadd.f32 0.0, %v726
        %v728 = vpop.f32.mrb[0].mxu0
        %729 = vmatprep.mubr.f32.mxu0 0.0
        %730 = vmatmul.mubr.f32.gmra.mrb[0].mxu0 %v503
        %v731 = vpop.f32.mrb[0].mxu0
        %v732 = vadd.f32 0.0, %v731
        %v733 = vpop.f32.mrb[0].mxu0
        %734 = vmatprep.mubr.f32.mxu0 0.0
        %735 = vmatmul.mubr.f32.gmra.mrb[0].mxu0 %v506
        %v736 = vpop.f32.mrb[0].mxu0
        %v737 = vadd.f32 0.0, %v736
        %v738 = vpop.f32.mrb[0].mxu0
        %739 = vmatprep.mubr.f32.mxu0 0.0
        %740 = vmatmul.mubr.f32.gmra.mrb[0].mxu0 %v509
        %v741 = vpop.f32.mrb[0].mxu0
        %v742 = vadd.f32 0.0, %v741
        %v743 = vpop.f32.mrb[0].mxu0
        %744 = vmatprep.mubr.f32.mxu0 0.0
        %745 = vmatmul.mubr.f32.gmra.mrb[0].mxu0 %v512
        %v746 = vpop.f32.mrb[0].mxu0
        %v747 = vadd.f32 0.0, %v746
        %v748 = vpop.f32.mrb[0].mxu0
        %749 = vmatprep.mubr.f32.mxu0 0.0
        %750 = vmatmul.mubr.f32.gmra.mrb[0].mxu0 %v515
        %v751 = vpop.f32.mrb[0].mxu0
        %v752 = vadd.f32 0.0, %v751
        %v753 = vpop.f32.mrb[0].mxu0
        %754 = vmatprep.mubr.f32.mxu0 0.0
        %755 = vmatmul.mubr.f32.gmra.mrb[0].mxu0 %v518
        %v756 = vpop.f32.mrb[0].mxu0
        %v757 = vadd.f32 0.0, %v756
        %v758 = vpop.f32.mrb[0].mxu0
        %759 = vmatprep.mubr.f32.mxu0 0.0
        %760 = vmatmul.mubr.f32.gmra.mrb[0].mxu0 %v521
        %v761 = vpop.f32.mrb[0].mxu0
        %v762 = vadd.f32 0.0, %v761
        %v763 = vpop.f32.mrb[0].mxu0
        %764 = vmatprep.mubr.f32.mxu0 0.0
        %765 = vmatmul.mubr.f32.gmra.mrb[0].mxu0 %v524
        %v766 = vpop.f32.mrb[0].mxu0
        %v767 = vadd.f32 0.0, %v766
        %v768 = vpop.f32.mrb[0].mxu0
        %769 = vmatprep.mubr.f32.mxu0 0.0
        %770 = vmatmul.mubr.f32.gmra.mrb[0].mxu0 %v527
        %v771 = vpop.f32.mrb[0].mxu0
        %v772 = vadd.f32 0.0, %v771
        %v773 = vpop.f32.mrb[0].mxu0
        %774 = vmatprep.mubr.f32.mxu0 0.0
        %775 = vmatmul.mubr.f32.gmra.mrb[0].mxu0 %v530
        %v776 = vpop.f32.mrb[0].mxu0
        %v777 = vadd.f32 0.0, %v776
        %v778 = vpop.f32.mrb[0].mxu0
        %779 = vmatprep.mubr.f32.mxu0 0.0
        %780 = vmatmul.mubr.f32.gmra.mrb[0].mxu0 %v533
        %v781 = vpop.f32.mrb[0].mxu0
        %v782 = vadd.f32 0.0, %v781
        %v783 = vpop.f32.mrb[0].mxu0
        %784 = vmatprep.mubr.f32.mxu0 0.0
        %785 = vmatmul.mubr.f32.gmra.mrb[0].mxu0 %v536
        %v786 = vpop.f32.mrb[0].mxu0
        %v787 = vadd.f32 0.0, %v786
        %v788 = vpop.f32.mrb[0].mxu0
        %789 = vmatprep.mubr.f32.mxu0 0.0
        %790 = vmatmul.mubr.f32.gmra.mrb[0].mxu0 %v539
        %v791 = vpop.f32.mrb[0].mxu0
        %v792 = vadd.f32 0.0, %v791
        %v793 = vpop.f32.mrb[0].mxu0
        %794 = vmatprep.mubr.f32.mxu0 0.0
        %795 = vmatmul.mubr.f32.gmra.mrb[0].mxu0 %v542
        %v796 = vpop.f32.mrb[0].mxu0
        %v797 = vadd.f32 0.0, %v796
        %v798 = vpop.f32.mrb[0].mxu0
        %799 = vmatprep.mubr.f32.mxu0 0.0
        %800 = vmatmul.mubr.f32.gmra.mrb[0].mxu0 %v545
        %v801 = vpop.f32.mrb[0].mxu0
        %v802 = vadd.f32 0.0, %v801
        %v803 = vpop.f32.mrb[0].mxu0
        %804 = vmatprep.mubr.f32.mxu0 0.0
        %805 = vmatmul.mubr.f32.gmra.mrb[0].mxu0 %v548
        %v806 = vpop.f32.mrb[0].mxu0
        %v807 = vadd.f32 0.0, %v806
        %v808 = vpop.f32.mrb[0].mxu0
        %809 = vmatprep.mubr.f32.mxu0 0.0
        %810 = vmatmul.mubr.f32.gmra.mrb[0].mxu0 %v551
        %v811 = vpop.f32.mrb[0].mxu0
        %v812 = vadd.f32 0.0, %v811
        %v813 = vpop.f32.mrb[0].mxu0
        %814 = vmatprep.mubr.f32.mxu0 0.0
        %815 = vmatmul.mubr.f32.gmra.mrb[0].mxu0 %v554
        %v816 = vpop.f32.mrb[0].mxu0
        %v817 = vadd.f32 0.0, %v816
        %v818 = vpop.f32.mrb[0].mxu0
        %819 = vmatprep.mubr.f32.mxu0 0.0
        %820 = vmatmul.mubr.f32.gmra.mrb[0].mxu0 %v557
        %v821 = vpop.f32.mrb[0].mxu0
        %v822 = vadd.f32 0.0, %v821
        %v823 = vpop.f32.mrb[0].mxu0
        %824 = vmatprep.mubr.f32.mxu0 0.0
        %825 = vmatmul.mubr.f32.gmra.mrb[0].mxu0 %v560
        %v826 = vpop.f32.mrb[0].mxu0
        %v827 = vadd.f32 0.0, %v826
        %v828 = vpop.f32.mrb[0].mxu0
        %829 = vmatprep.mubr.f32.mxu0 0.0
        %830 = vmatmul.mubr.f32.gmra.mrb[0].mxu0 %v563
        %v831 = vpop.f32.mrb[0].mxu0
        %v832 = vadd.f32 0.0, %v831
        %v833 = vpop.f32.mrb[0].mxu0
        %834 = vmatprep.mubr.f32.mxu0 0.0
        %835 = vmatmul.mubr.f32.gmra.mrb[0].mxu0 %v566
        %v836 = vpop.f32.mrb[0].mxu0
        %v837 = vadd.f32 0.0, %v836
        %v838 = vpop.f32.mrb[0].mxu0
        %839 = vmatprep.mubr.f32.mxu0 0.0
        %840 = vmatmul.mubr.f32.gmra.mrb[0].mxu0 %v569
        %v841 = vpop.f32.mrb[0].mxu0
        %v842 = vadd.f32 0.0, %v841
        %v843 = vpop.f32.mrb[0].mxu0
        %844 = vdwg.mxu0
        %v845 = vld [vmem:[%s3] sm:$0x1]
        %v847 = vlaneseq
        %v848 = vshrl.u32 %v847, 7
        %v849 = vsub.s32 0, %v848
        %v850 = vrot.slane %v845, %v849
        %v852 = vmul.f32 %v642, %v850
        %v853 = vmul.f32 %v647, %v850
        %v854 = vmul.f32 %v652, %v850
        %v855 = vmul.f32 %v657, %v850
        %v856 = vmul.f32 %v662, %v850
        %v857 = vmul.f32 %v667, %v850
        %v858 = vmul.f32 %v672, %v850
        %v859 = vmul.f32 %v677, %v850
        %v860 = vmul.f32 %v682, %v850
        %v861 = vmul.f32 %v687, %v850
        %v862 = vmul.f32 %v692, %v850
        %v863 = vmul.f32 %v697, %v850
        %v864 = vmul.f32 %v702, %v850
        %v865 = vmul.f32 %v707, %v850
        %v866 = vmul.f32 %v712, %v850
        %v867 = vmul.f32 %v717, %v850
        %v868 = vmul.f32 %v722, %v850
        %v869 = vmul.f32 %v727, %v850
        %v870 = vmul.f32 %v732, %v850
        %v871 = vmul.f32 %v737, %v850
        %v872 = vmul.f32 %v742, %v850
        %v873 = vmul.f32 %v747, %v850
        %v874 = vmul.f32 %v752, %v850
        %v875 = vmul.f32 %v757, %v850
        %v876 = vmul.f32 %v762, %v850
        %v877 = vmul.f32 %v767, %v850
        %v878 = vmul.f32 %v772, %v850
        %v879 = vmul.f32 %v777, %v850
        %v880 = vmul.f32 %v782, %v850
        %v881 = vmul.f32 %v787, %v850
        %v882 = vmul.f32 %v792, %v850
        %v883 = vmul.f32 %v797, %v850
        %v884 = vmul.f32 %v802, %v850
        %v885 = vmul.f32 %v807, %v850
        %v886 = vmul.f32 %v812, %v850
        %v887 = vmul.f32 %v817, %v850
        %v888 = vmul.f32 %v822, %v850
        %v889 = vmul.f32 %v827, %v850
        %v890 = vmul.f32 %v832, %v850
        %v891 = vmul.f32 %v837, %v850
        %v892 = vmul.f32 %v842, %v850
        %v893 = vld [vmem:[%s4] sm:$0x1]
        %v895 = vlaneseq
        %v896 = vshrl.u32 %v895, 7
        %v897 = vsub.s32 0, %v896
        %v898 = vrot.slane %v893, %v897
        %v900 = vadd.f32 %v852, %v898
        %v901 = vadd.f32 %v853, %v898
        %v902 = vadd.f32 %v854, %v898
        %v903 = vadd.f32 %v855, %v898
        %v904 = vadd.f32 %v856, %v898
        %v905 = vadd.f32 %v857, %v898
        %v906 = vadd.f32 %v858, %v898
        %v907 = vadd.f32 %v859, %v898
        %v908 = vadd.f32 %v860, %v898
        %v909 = vadd.f32 %v861, %v898
        %v910 = vadd.f32 %v862, %v898
        %v911 = vadd.f32 %v863, %v898
        %v912 = vadd.f32 %v864, %v898
        %v913 = vadd.f32 %v865, %v898
        %v914 = vadd.f32 %v866, %v898
        %v915 = vadd.f32 %v867, %v898
        %v916 = vadd.f32 %v868, %v898
        %v917 = vadd.f32 %v869, %v898
        %v918 = vadd.f32 %v870, %v898
        %v919 = vadd.f32 %v871, %v898
        %v920 = vadd.f32 %v872, %v898
        %v921 = vadd.f32 %v873, %v898
        %v922 = vadd.f32 %v874, %v898
        %v923 = vadd.f32 %v875, %v898
        %v924 = vadd.f32 %v876, %v898
        %v925 = vadd.f32 %v877, %v898
        %v926 = vadd.f32 %v878, %v898
        %v927 = vadd.f32 %v879, %v898
        %v928 = vadd.f32 %v880, %v898
        %v929 = vadd.f32 %v881, %v898
        %v930 = vadd.f32 %v882, %v898
        %v931 = vadd.f32 %v883, %v898
        %v932 = vadd.f32 %v884, %v898
        %v933 = vadd.f32 %v885, %v898
        %v934 = vadd.f32 %v886, %v898
        %v935 = vadd.f32 %v887, %v898
        %v936 = vadd.f32 %v888, %v898
        %v937 = vadd.f32 %v889, %v898
        %v938 = vadd.f32 %v890, %v898
        %v939 = vadd.f32 %v891, %v898
        %v940 = vadd.f32 %v892, %v898
        %v941 = vmax.f32 %v900, 0.0
        %v942 = vmax.f32 %v901, 0.0
        %v943 = vmax.f32 %v902, 0.0
        %v944 = vmax.f32 %v903, 0.0
        %v945 = vmax.f32 %v904, 0.0
        %v946 = vmax.f32 %v905, 0.0
        %v947 = vmax.f32 %v906, 0.0
        %v948 = vmax.f32 %v907, 0.0
        %v949 = vmax.f32 %v908, 0.0
        %v950 = vmax.f32 %v909, 0.0
        %v951 = vmax.f32 %v910, 0.0
        %v952 = vmax.f32 %v911, 0.0
        %v953 = vmax.f32 %v912, 0.0
        %v954 = vmax.f32 %v913, 0.0
        %v955 = vmax.f32 %v914, 0.0
        %v956 = vmax.f32 %v915, 0.0
        %v957 = vmax.f32 %v916, 0.0
        %v958 = vmax.f32 %v917, 0.0
        %v959 = vmax.f32 %v918, 0.0
        %v960 = vmax.f32 %v919, 0.0
        %v961 = vmax.f32 %v920, 0.0
        %v962 = vmax.f32 %v921, 0.0
        %v963 = vmax.f32 %v922, 0.0
        %v964 = vmax.f32 %v923, 0.0
        %v965 = vmax.f32 %v924, 0.0
        %v966 = vmax.f32 %v925, 0.0
        %v967 = vmax.f32 %v926, 0.0
        %v968 = vmax.f32 %v927, 0.0
        %v969 = vmax.f32 %v928, 0.0
        %v970 = vmax.f32 %v929, 0.0
        %v971 = vmax.f32 %v930, 0.0
        %v972 = vmax.f32 %v931, 0.0
        %v973 = vmax.f32 %v932, 0.0
        %v974 = vmax.f32 %v933, 0.0
        %v975 = vmax.f32 %v934, 0.0
        %v976 = vmax.f32 %v935, 0.0
        %v977 = vmax.f32 %v936, 0.0
        %v978 = vmax.f32 %v937, 0.0
        %v979 = vmax.f32 %v938, 0.0
        %v980 = vmax.f32 %v939, 0.0
        %v981 = vmax.f32 %v940, 0.0
        %v982 = vmin.f32 %v941, 6.0
        %v983 = vmin.f32 %v942, 6.0
        %v984 = vmin.f32 %v943, 6.0
        %v985 = vmin.f32 %v944, 6.0
        %v986 = vmin.f32 %v945, 6.0
        %v987 = vmin.f32 %v946, 6.0
        %v988 = vmin.f32 %v947, 6.0
        %v989 = vmin.f32 %v948, 6.0
        %v990 = vmin.f32 %v949, 6.0
        %v991 = vmin.f32 %v950, 6.0
        %v992 = vmin.f32 %v951, 6.0
        %v993 = vmin.f32 %v952, 6.0
        %v994 = vmin.f32 %v953, 6.0
        %v995 = vmin.f32 %v954, 6.0
        %v996 = vmin.f32 %v955, 6.0
        %v997 = vmin.f32 %v956, 6.0
        %v998 = vmin.f32 %v957, 6.0
        %v999 = vmin.f32 %v958, 6.0
        %v1000 = vmin.f32 %v959, 6.0
        %v1001 = vmin.f32 %v960, 6.0
        %v1002 = vmin.f32 %v961, 6.0
        %v1003 = vmin.f32 %v962, 6.0
        %v1004 = vmin.f32 %v963, 6.0
        %v1005 = vmin.f32 %v964, 6.0
        %v1006 = vmin.f32 %v965, 6.0
        %v1007 = vmin.f32 %v966, 6.0
        %v1008 = vmin.f32 %v967, 6.0
        %v1009 = vmin.f32 %v968, 6.0
        %v1010 = vmin.f32 %v969, 6.0
        %v1011 = vmin.f32 %v970, 6.0
        %v1012 = vmin.f32 %v971, 6.0
        %v1013 = vmin.f32 %v972, 6.0
        %v1014 = vmin.f32 %v973, 6.0
        %v1015 = vmin.f32 %v974, 6.0
        %v1016 = vmin.f32 %v975, 6.0
        %v1017 = vmin.f32 %v976, 6.0
        %v1018 = vmin.f32 %v977, 6.0
        %v1019 = vmin.f32 %v978, 6.0
        %v1020 = vmin.f32 %v979, 6.0
        %v1021 = vmin.f32 %v980, 6.0
        %v1022 = vmin.f32 %v981, 6.0
        %vm1023 = vcmask 195584
        %1024 = vst.msk [vmem:[#allocation2] sm:$0xff] %vm1023, %v982
        %1025 = vst.msk [vmem:[#allocation2 + $0x8] sm:$0xff] %vm1023, %v983
        %1026 = vst.msk [vmem:[#allocation2 + $0x10] sm:$0xff] %vm1023, %v984
        %1027 = vst.msk [vmem:[#allocation2 + $0x18] sm:$0xff] %vm1023, %v985
        %1028 = vst.msk [vmem:[#allocation2 + $0x20] sm:$0xff] %vm1023, %v986
        %1029 = vst.msk [vmem:[#allocation2 + $0x28] sm:$0xff] %vm1023, %v987
        %1030 = vst.msk [vmem:[#allocation2 + $0x30] sm:$0xff] %vm1023, %v988
        %1031 = vst.msk [vmem:[#allocation2 + $0x38] sm:$0xff] %vm1023, %v989
        %1032 = vst.msk [vmem:[#allocation2 + $0x40] sm:$0xff] %vm1023, %v990
        %1033 = vst.msk [vmem:[#allocation2 + $0x48] sm:$0xff] %vm1023, %v991
        %1034 = vst.msk [vmem:[#allocation2 + $0x50] sm:$0xff] %vm1023, %v992
        %1035 = vst.msk [vmem:[#allocation2 + $0x58] sm:$0xff] %vm1023, %v993
        %1036 = vst.msk [vmem:[#allocation2 + $0x60] sm:$0xff] %vm1023, %v994
        %1037 = vst.msk [vmem:[#allocation2 + $0x68] sm:$0xff] %vm1023, %v995
        %1038 = vst.msk [vmem:[#allocation2 + $0x70] sm:$0xff] %vm1023, %v996
        %1039 = vst.msk [vmem:[#allocation2 + $0x78] sm:$0xff] %vm1023, %v997
        %1040 = vst.msk [vmem:[#allocation2 + $0x80] sm:$0xff] %vm1023, %v998
        %1041 = vst.msk [vmem:[#allocation2 + $0x88] sm:$0xff] %vm1023, %v999
        %1042 = vst.msk [vmem:[#allocation2 + $0x90] sm:$0xff] %vm1023, %v1000
        %1043 = vst.msk [vmem:[#allocation2 + $0x98] sm:$0xff] %vm1023, %v1001
        %1044 = vst.msk [vmem:[#allocation2 + $0xa0] sm:$0xff] %vm1023, %v1002
        %1045 = vst.msk [vmem:[#allocation2 + $0xa8] sm:$0xff] %vm1023, %v1003
        %1046 = vst.msk [vmem:[#allocation2 + $0xb0] sm:$0xff] %vm1023, %v1004
        %1047 = vst.msk [vmem:[#allocation2 + $0xb8] sm:$0xff] %vm1023, %v1005
        %1048 = vst.msk [vmem:[#allocation2 + $0xc0] sm:$0xff] %vm1023, %v1006
        %1049 = vst.msk [vmem:[#allocation2 + $0xc8] sm:$0xff] %vm1023, %v1007
        %1050 = vst.msk [vmem:[#allocation2 + $0xd0] sm:$0xff] %vm1023, %v1008
        %1051 = vst.msk [vmem:[#allocation2 + $0xd8] sm:$0xff] %vm1023, %v1009
        %1052 = vst.msk [vmem:[#allocation2 + $0xe0] sm:$0xff] %vm1023, %v1010
        %1053 = vst.msk [vmem:[#allocation2 + $0xe8] sm:$0xff] %vm1023, %v1011
        %1054 = vst.msk [vmem:[#allocation2 + $0xf0] sm:$0xff] %vm1023, %v1012
        %1055 = vst.msk [vmem:[#allocation2 + $0xf8] sm:$0xff] %vm1023, %v1013
        %1056 = vst.msk [vmem:[#allocation2 + $0x100] sm:$0xff] %vm1023, %v1014
        %1057 = vst.msk [vmem:[#allocation2 + $0x108] sm:$0xff] %vm1023, %v1015
        %1058 = vst.msk [vmem:[#allocation2 + $0x110] sm:$0xff] %vm1023, %v1016
        %1059 = vst.msk [vmem:[#allocation2 + $0x118] sm:$0xff] %vm1023, %v1017
        %1060 = vst.msk [vmem:[#allocation2 + $0x120] sm:$0xff] %vm1023, %v1018
        %1061 = vst.msk [vmem:[#allocation2 + $0x128] sm:$0xff] %vm1023, %v1019
        %1062 = vst.msk [vmem:[#allocation2 + $0x130] sm:$0xff] %vm1023, %v1020
        %1063 = vst.msk [vmem:[#allocation2 + $0x138] sm:$0xff] %vm1023, %v1021
        %vm1064 = vcmask 191488
        %1065 = vst.msk [vmem:[#allocation2 + $0x140] sm:$0xf] %vm1064, %v1022
        %v1066 = vld [vmem:[%s5] sm:$0xff]
        %v1067 = vld [vmem:[%s5 + $0x8] sm:$0x1]
        %v1068 = vld [vmem:[%s6] sm:$0x1]
        %v1069 = vld [vmem:[%s7] sm:$0x1]
        loop: start=0, step=1, limit=16
        $region65: #{tpu_custom_call.1} parent=63 // loop_pre_header
          _
        $region66: #{tpu_custom_call.1} parent=63 // loop_header
          %s1071 = sphi 0, %s1075
          %p1072 = scmp.ge.s32.totalorder %s1071, 16
        $region67: #{tpu_custom_call.1} parent=63 // loop_header_branch
          %1074 = sbr.rel (%p1072) target = $region71
        $region68: #{tpu_custom_call.1} parent=63 // loop_body
          %s1076 = smul.u32 %s1071, 18
          %s1077 = scalar_lea.vmem [#allocation2], %s1076
          %v1078 = vld [vmem:[%s1077] sm:$0xff]
          %v1079 = vld [vmem:[%s1077 + $0x8] sm:$0xff]
          %v1080 = vld [vmem:[%s1077 + $0x10] sm:$0x3]
          %v1081 = vlaneseq
          %v1082 = vshrl.u32 %v1081, 7
          %v1083 = vsub.s32 0, %v1082
          %v1084 = vrot.slane %v1066, %v1083
          %v1085 = vmul.f32 %v1078, %v1084
          %v1086 = vmul.f32 %v1079, %v1084
          %v1087 = vadd.f32 %v1085, 0.0
          %v1088 = vadd.f32 %v1086, 0.0
          %v1089 = vlaneseq
          %v1090 = vshrl.u32 %v1089, 7
          %v1091 = vsub.s32 1, %v1090
          %v1092 = vrot.slane %v1066, %v1091
          %v1093 = vmul.f32 %v1078, %v1092
          %v1094 = vmul.f32 %v1079, %v1092
          %v1095 = vmul.f32 %v1080, %v1092
          %vm1099 = vcmask 1046528
          %v1100 = vrot.slane %v1093, 1
          %v1101 = vrot.slane %v1094, 1
          %v1102 = vsel %vm1099, %v1100, %v1101
          %v1103 = vrot.slane %v1095, 1
          %v1104 = vsel %vm1099, %v1101, %v1103
          %v1107 = vadd.f32 %v1087, %v1102
          %v1108 = vadd.f32 %v1088, %v1104
          %v1109 = vlaneseq
          %v1110 = vshrl.u32 %v1109, 7
          %v1111 = vsub.s32 2, %v1110
          %v1112 = vrot.slane %v1066, %v1111
          %v1113 = vmul.f32 %v1078, %v1112
          %v1114 = vmul.f32 %v1079, %v1112
          %v1115 = vmul.f32 %v1080, %v1112
          %vm1119 = vcmask 1045504
          %v1120 = vrot.slane %v1113, 2
          %v1121 = vrot.slane %v1114, 2
          %v1122 = vsel %vm1119, %v1120, %v1121
          %v1123 = vrot.slane %v1115, 2
          %v1124 = vsel %vm1119, %v1121, %v1123
          %v1127 = vadd.f32 %v1107, %v1122
          %v1128 = vadd.f32 %v1108, %v1124
          %s1129 = sadd.s32 %s1071, 1
          %s1130 = smul.u32 %s1129, 18
          %s1131 = scalar_lea.vmem [#allocation2], %s1130
          %v1132 = vld [vmem:[%s1131] sm:$0xff]
          %v1133 = vld [vmem:[%s1131 + $0x8] sm:$0xff]
          %v1134 = vld [vmem:[%s1131 + $0x10] sm:$0x3]
          %v1135 = vlaneseq
          %v1136 = vshrl.u32 %v1135, 7
          %v1137 = vsub.s32 3, %v1136
          %v1138 = vrot.slane %v1066, %v1137
          %v1139 = vmul.f32 %v1132, %v1138
          %v1140 = vmul.f32 %v1133, %v1138
          %v1141 = vadd.f32 %v1127, %v1139
          %v1142 = vadd.f32 %v1128, %v1140
          %v1143 = vlaneseq
          %v1144 = vshrl.u32 %v1143, 7
          %v1145 = vsub.s32 4, %v1144
          %v1146 = vrot.slane %v1066, %v1145
          %v1147 = vmul.f32 %v1132, %v1146
          %v1148 = vmul.f32 %v1133, %v1146
          %v1149 = vmul.f32 %v1134, %v1146
          %v1153 = vrot.slane %v1147, 1
          %v1154 = vrot.slane %v1148, 1
          %v1155 = vsel %vm1099, %v1153, %v1154
          %v1156 = vrot.slane %v1149, 1
          %v1157 = vsel %vm1099, %v1154, %v1156
          %v1160 = vadd.f32 %v1141, %v1155
          %v1161 = vadd.f32 %v1142, %v1157
          %v1162 = vlaneseq
          %v1163 = vshrl.u32 %v1162, 7
          %v1164 = vsub.s32 5, %v1163
          %v1165 = vrot.slane %v1066, %v1164
          %v1166 = vmul.f32 %v1132, %v1165
          %v1167 = vmul.f32 %v1133, %v1165
          %v1168 = vmul.f32 %v1134, %v1165
          %v1172 = vrot.slane %v1166, 2
          %v1173 = vrot.slane %v1167, 2
          %v1174 = vsel %vm1119, %v1172, %v1173
          %v1175 = vrot.slane %v1168, 2
          %v1176 = vsel %vm1119, %v1173, %v1175
          %v1179 = vadd.f32 %v1160, %v1174
          %v1180 = vadd.f32 %v1161, %v1176
          %s1181 = sadd.s32 %s1071, 2
          %s1182 = smul.u32 %s1181, 18
          %s1183 = scalar_lea.vmem [#allocation2], %s1182
          %v1184 = vld [vmem:[%s1183] sm:$0xff]
          %v1185 = vld [vmem:[%s1183 + $0x8] sm:$0xff]
          %v1186 = vld [vmem:[%s1183 + $0x10] sm:$0x3]
          %v1187 = vlaneseq
          %v1188 = vshrl.u32 %v1187, 7
          %v1189 = vsub.s32 6, %v1188
          %v1190 = vrot.slane %v1066, %v1189
          %v1191 = vmul.f32 %v1184, %v1190
          %v1192 = vmul.f32 %v1185, %v1190
          %v1193 = vadd.f32 %v1179, %v1191
          %v1194 = vadd.f32 %v1180, %v1192
          %v1195 = vlaneseq
          %v1196 = vshrl.u32 %v1195, 7
          %v1197 = vsub.s32 7, %v1196
          %v1198 = vrot.slane %v1066, %v1197
          %v1199 = vmul.f32 %v1184, %v1198
          %v1200 = vmul.f32 %v1185, %v1198
          %v1201 = vmul.f32 %v1186, %v1198
          %v1205 = vrot.slane %v1199, 1
          %v1206 = vrot.slane %v1200, 1
          %v1207 = vsel %vm1099, %v1205, %v1206
          %v1208 = vrot.slane %v1201, 1
          %v1209 = vsel %vm1099, %v1206, %v1208
          %v1212 = vadd.f32 %v1193, %v1207
          %v1213 = vadd.f32 %v1194, %v1209
          %v1214 = vlaneseq
          %v1215 = vshrl.u32 %v1214, 7
          %v1216 = vsub.s32 0, %v1215
          %v1217 = vrot.slane %v1067, %v1216
          %v1218 = vmul.f32 %v1184, %v1217
          %v1219 = vmul.f32 %v1185, %v1217
          %v1220 = vmul.f32 %v1186, %v1217
          %v1224 = vrot.slane %v1218, 2
          %v1225 = vrot.slane %v1219, 2
          %v1226 = vsel %vm1119, %v1224, %v1225
          %v1227 = vrot.slane %v1220, 2
          %v1228 = vsel %vm1119, %v1225, %v1227
          %v1231 = vadd.f32 %v1212, %v1226
          %v1232 = vadd.f32 %v1213, %v1228
          %v1234 = vlaneseq
          %v1235 = vshrl.u32 %v1234, 7
          %v1236 = vsub.s32 0, %v1235
          %v1237 = vrot.slane %v1068, %v1236
          %v1239 = vmul.f32 %v1231, %v1237
          %v1240 = vmul.f32 %v1232, %v1237
          %v1242 = vlaneseq
          %v1243 = vshrl.u32 %v1242, 7
          %v1244 = vsub.s32 0, %v1243
          %v1245 = vrot.slane %v1069, %v1244
          %v1247 = vadd.f32 %v1239, %v1245
          %v1248 = vadd.f32 %v1240, %v1245
          %v1249 = vmax.f32 %v1247, 0.0
          %v1250 = vmax.f32 %v1248, 0.0
          %v1251 = vmin.f32 %v1249, 6.0
          %v1252 = vmin.f32 %v1250, 6.0
          %s1253 = smul.u32 %s1071, 16
          %s1254 = scalar_lea.vmem [#allocation3], %s1253
          %1255 = vst.msk [vmem:[%s1254] sm:$0xff] %vm1023, %v1251
          %1256 = vst.msk [vmem:[%s1254 + $0x8] sm:$0xff] %vm1023, %v1252
        $region69: #{tpu_custom_call.1} parent=63 // loop_footer
          %s1075 = sadd.s32 1, %s1071
        $region70: #{tpu_custom_call.1} parent=63 // loop_footer_branch
          %1070 = sbr.rel target = $region66
        $region71: #{tpu_custom_call.1} parent=63 // loop_exit
          _
        %v1257 = vld [vmem:[#allocation3] sm:$0xff]
        %v1258 = vld [vmem:[#allocation3 + $0x8] sm:$0xff]
        %v1259 = vld [vmem:[#allocation3 + $0x10] sm:$0xff]
        %v1260 = vld [vmem:[#allocation3 + $0x18] sm:$0xff]
        %v1261 = vld [vmem:[#allocation3 + $0x20] sm:$0xff]
        %v1262 = vld [vmem:[#allocation3 + $0x28] sm:$0xff]
        %v1263 = vld [vmem:[#allocation3 + $0x30] sm:$0xff]
        %v1264 = vld [vmem:[#allocation3 + $0x38] sm:$0xff]
        %v1265 = vld [vmem:[#allocation3 + $0x40] sm:$0xff]
        %v1266 = vld [vmem:[#allocation3 + $0x48] sm:$0xff]
        %v1267 = vld [vmem:[#allocation3 + $0x50] sm:$0xff]
        %v1268 = vld [vmem:[#allocation3 + $0x58] sm:$0xff]
        %v1269 = vld [vmem:[#allocation3 + $0x60] sm:$0xff]
        %v1270 = vld [vmem:[#allocation3 + $0x68] sm:$0xff]
        %v1271 = vld [vmem:[#allocation3 + $0x70] sm:$0xff]
        %v1272 = vld [vmem:[#allocation3 + $0x78] sm:$0xff]
        %v1273 = vld [vmem:[#allocation3 + $0x80] sm:$0xff]
        %v1274 = vld [vmem:[#allocation3 + $0x88] sm:$0xff]
        %v1275 = vld [vmem:[#allocation3 + $0x90] sm:$0xff]
        %v1276 = vld [vmem:[#allocation3 + $0x98] sm:$0xff]
        %v1277 = vld [vmem:[#allocation3 + $0xa0] sm:$0xff]
        %v1278 = vld [vmem:[#allocation3 + $0xa8] sm:$0xff]
        %v1279 = vld [vmem:[#allocation3 + $0xb0] sm:$0xff]
        %v1280 = vld [vmem:[#allocation3 + $0xb8] sm:$0xff]
        %v1281 = vld [vmem:[#allocation3 + $0xc0] sm:$0xff]
        %v1282 = vld [vmem:[#allocation3 + $0xc8] sm:$0xff]
        %v1283 = vld [vmem:[#allocation3 + $0xd0] sm:$0xff]
        %v1284 = vld [vmem:[#allocation3 + $0xd8] sm:$0xff]
        %v1285 = vld [vmem:[#allocation3 + $0xe0] sm:$0xff]
        %v1286 = vld [vmem:[#allocation3 + $0xe8] sm:$0xff]
        %v1287 = vld [vmem:[#allocation3 + $0xf0] sm:$0xff]
        %v1288 = vld [vmem:[#allocation3 + $0xf8] sm:$0xff]
        %v1289 = vld [vmem:[%s8] sm:$0xf]
        %v1291 = vsel %vm1023, %v1289, 0
        %v1294 = vsel %vm1023, %v1257, 0
        %v1297 = vsel %vm1023, %v1258, 0
        %v1300 = vsel %vm1023, %v1259, 0
        %v1303 = vsel %vm1023, %v1260, 0
        %v1306 = vsel %vm1023, %v1261, 0
        %v1309 = vsel %vm1023, %v1262, 0
        %v1312 = vsel %vm1023, %v1263, 0
        %v1315 = vsel %vm1023, %v1264, 0
        %v1318 = vsel %vm1023, %v1265, 0
        %v1321 = vsel %vm1023, %v1266, 0
        %v1324 = vsel %vm1023, %v1267, 0
        %v1327 = vsel %vm1023, %v1268, 0
        %v1330 = vsel %vm1023, %v1269, 0
        %v1333 = vsel %vm1023, %v1270, 0
        %v1336 = vsel %vm1023, %v1271, 0
        %v1339 = vsel %vm1023, %v1272, 0
        %v1342 = vsel %vm1023, %v1273, 0
        %v1345 = vsel %vm1023, %v1274, 0
        %v1348 = vsel %vm1023, %v1275, 0
        %v1351 = vsel %vm1023, %v1276, 0
        %v1354 = vsel %vm1023, %v1277, 0
        %v1357 = vsel %vm1023, %v1278, 0
        %v1360 = vsel %vm1023, %v1279, 0
        %v1363 = vsel %vm1023, %v1280, 0
        %v1366 = vsel %vm1023, %v1281, 0
        %v1369 = vsel %vm1023, %v1282, 0
        %v1372 = vsel %vm1023, %v1283, 0
        %v1375 = vsel %vm1023, %v1284, 0
        %v1378 = vsel %vm1023, %v1285, 0
        %v1381 = vsel %vm1023, %v1286, 0
        %v1384 = vsel %vm1023, %v1287, 0
        %v1387 = vsel %vm1023, %v1288, 0
        %1389 = vmatprep.subr.mxu0 0.0
        %1390 = vmatpush1.xpose.msra.mxu0 %v1294
        %1391 = vmatprep.subr.mxu0 0.0
        %1392 = vmatpush1.xpose.msra.mxu0 %v1297
        %1393 = vmatprep.subr.mxu0 0.0
        %1394 = vmatpush1.xpose.msra.mxu0 %v1300
        %1395 = vmatprep.subr.mxu0 0.0
        %1396 = vmatpush1.xpose.msra.mxu0 %v1303
        %1397 = vmatprep.subr.mxu0 0.0
        %1398 = vmatpush1.xpose.msra.mxu0 %v1306
        %1399 = vmatprep.subr.mxu0 0.0
        %1400 = vmatpush1.xpose.msra.mxu0 %v1309
        %1401 = vmatprep.subr.mxu0 0.0
        %1402 = vmatpush1.xpose.msra.mxu0 %v1312
        %1403 = vmatprep.subr.mxu0 0.0
        %1404 = vmatpush1.xpose.msra.mxu0 %v1315
        %1405 = vmatprep.subr.mxu0 0.0
        %1406 = vmatpush1.xpose.msra.mxu0 %v1318
        %1407 = vmatprep.subr.mxu0 0.0
        %1408 = vmatpush1.xpose.msra.mxu0 %v1321
        %1409 = vmatprep.subr.mxu0 0.0
        %1410 = vmatpush1.xpose.msra.mxu0 %v1324
        %1411 = vmatprep.subr.mxu0 0.0
        %1412 = vmatpush1.xpose.msra.mxu0 %v1327
        %1413 = vmatprep.subr.mxu0 0.0
        %1414 = vmatpush1.xpose.msra.mxu0 %v1330
        %1415 = vmatprep.subr.mxu0 0.0
        %1416 = vmatpush1.xpose.msra.mxu0 %v1333
        %1417 = vmatprep.subr.mxu0 0.0
        %1418 = vmatpush1.xpose.msra.mxu0 %v1336
        %1419 = vmatprep.subr.mxu0 0.0
        %1420 = vmatpush1.xpose.msra.mxu0 %v1339
        %1421 = vmatprep.subr.mxu0 0.0
        %1422 = vmatpush1.xpose.msra.mxu0 %v1342
        %1423 = vmatprep.subr.mxu0 0.0
        %1424 = vmatpush1.xpose.msra.mxu0 %v1345
        %1425 = vmatprep.subr.mxu0 0.0
        %1426 = vmatpush1.xpose.msra.mxu0 %v1348
        %1427 = vmatprep.subr.mxu0 0.0
        %1428 = vmatpush1.xpose.msra.mxu0 %v1351
        %1429 = vmatprep.subr.mxu0 0.0
        %1430 = vmatpush1.xpose.msra.mxu0 %v1354
        %1431 = vmatprep.subr.mxu0 0.0
        %1432 = vmatpush1.xpose.msra.mxu0 %v1357
        %1433 = vmatprep.subr.mxu0 0.0
        %1434 = vmatpush1.xpose.msra.mxu0 %v1360
        %1435 = vmatprep.subr.mxu0 0.0
        %1436 = vmatpush1.xpose.msra.mxu0 %v1363
        %1437 = vmatprep.subr.mxu0 0.0
        %1438 = vmatpush1.xpose.msra.mxu0 %v1366
        %1439 = vmatprep.subr.mxu0 0.0
        %1440 = vmatpush1.xpose.msra.mxu0 %v1369
        %1441 = vmatprep.subr.mxu0 0.0
        %1442 = vmatpush1.xpose.msra.mxu0 %v1372
        %1443 = vmatprep.subr.mxu0 0.0
        %1444 = vmatpush1.xpose.msra.mxu0 %v1375
        %1445 = vmatprep.subr.mxu0 0.0
        %1446 = vmatpush1.xpose.msra.mxu0 %v1378
        %1447 = vmatprep.subr.mxu0 0.0
        %1448 = vmatpush1.xpose.msra.mxu0 %v1381
        %1449 = vmatprep.subr.mxu0 0.0
        %1450 = vmatpush1.xpose.msra.mxu0 %v1384
        %1451 = vmatprep.subr.mxu0 0.0
        %1452 = vmatpush1.xpose.msra.mxu0 %v1387
        %1453 = vmatprep.mubr.f32.mxu0 0.0
        %1454 = vmatmul.mubr.f32.gmra.mrb[0].mxu0 %v1291
        %v1455 = vpop.f32.mrb[0].mxu0
        %v1456 = vadd.f32 0.0, %v1455
        %v1457 = vpop.f32.mrb[0].mxu0
        %v1458 = vadd.f32 0.0, %v1457
        %1459 = vdwg.mxu0
        %v1460 = vld [vmem:[%s9] sm:$0xf]
        %1462 = vset.pattern.permute.xlu0 0
        %1463 = vperm.xlu0 %1462, %v1460
        %v1464 = vpop.permute.xlu0 %1463
        %v1466 = vmul.f32 %v1456, %v1464
        %v1467 = vmul.f32 %v1458, %v1464
        %v1468 = vld [vmem:[%s10] sm:$0xf]
        %1470 = vset.pattern.permute.xlu0 0
        %1471 = vperm.xlu0 %1470, %v1468
        %v1472 = vpop.permute.xlu0 %1471
        %v1474 = vadd.f32 %v1466, %v1472
        %v1475 = vadd.f32 %v1467, %v1472
        %v1476 = vld [vmem:[%s404] sm:$0xff]
        %v1478 = vcombine.high %v1476, %v1476
        %v1480 = vadd.f32 %v1474, %v1476
        %v1481 = vadd.f32 %v1475, %v1478
        %v1484 = vcombine.low %v1480, %v1481
        %1486 = vst [vmem:[%s394] sm:$0xff] %v1484
        %s1487 = sand.u32 %s274, 1
        %s1488 = scalar_lea.sflag [#allocation5], %s1487
        %s1489 = sand.u32 %s274, 1
        %s1490 = smul.addr %s1489, 8
        %s1491 = scalar_lea.vmem [#allocation4], %s1490
        // Predicated region
        $region72: #{tpu_custom_call.1} parent=63 // pred_check
          %p1492 = pneg %p284
        $region73: #{tpu_custom_call.1} parent=63 // pred_check_branch
          %1494 = sbr.rel (%p1492) target = $region75
        $region74: #{tpu_custom_call.1} parent=63 // pred_region
          %s1496 = ssub.s32 128, 128
          %1497 = vsyncadd %s1488, %s1496
          %s1498 = smul.addr %s25, 2
          %s1499 = smul.addr %s1498, 64
          %s1500 = scalar_lea.hbm %s11, %s1499
          %s1502 = sshll.u32 %s1491, 4
          %s1503 = int_to_ptr.vmem [resolvable:$true] %s1502
          %1505 = dma.vmem_to_hbm [thread:$0]  %s1503, 128, %s1500, %s1488
        $region75: #{tpu_custom_call.1} parent=63 // pred_fallthru
          _
      $region64: #{tpu_custom_call.1} parent=5 // pred_fallthru
        _
      %p1506 = scmp.le.s32.totalorder 2, %s20
      // Predicated region
      $region76: #{tpu_custom_call.1} parent=5 // pred_check
        %p1507 = pneg %p1506
      $region77: #{tpu_custom_call.1} parent=5 // pred_check_branch
        %1509 = sbr.rel (%p1507) target = $region79
      $region78: #{tpu_custom_call.1} parent=5 // pred_region
        %s1510 = ssub.s32 %s20, 2
        // Predicated region
        $region80: #{tpu_custom_call.1} parent=78 // pred_check
          %p1511 = pneg %p290
        $region81: #{tpu_custom_call.1} parent=78 // pred_check_branch
          %1513 = sbr.rel (%p1511) target = $region83
        $region82: #{tpu_custom_call.1} parent=78 // pred_region
          %s1514 = sand.u32 %s275, 1
          %s1515 = scalar_lea.sflag [#allocation5], %s1514
          %s1516 = sand.u32 %s275, 1
          %s1517 = smul.addr %s1516, 8
          %s1518 = scalar_lea.vmem [#allocation4], %s1517
          %1519 = dma.done %s1515, 128
        $region83: #{tpu_custom_call.1} parent=78 // pred_fallthru
          _
      $region79: #{tpu_custom_call.1} parent=5 // pred_fallthru
        _
    $region6: #{tpu_custom_call.1} parent=1 // loop_footer
      %s24 = sadd.s32 1, %s20
    $region7: #{tpu_custom_call.1} parent=1 // loop_footer_branch
      %19 = sbr.rel target = $region3
    $region8: #{tpu_custom_call.1} parent=1 // loop_exit
      _
    %1520 = vsyncpa [#allocation5], 1
    %s1521 = scalar_lea.sflag [#allocation5], 1
    %1522 = vsyncpa %s1521, 1

</llo_original>
